<compile_context>
chip_gen: v6e
topology: v6e:2x2x1
jax: 0.10.0
libtpu: 0.0.40
codegen_flags: <defaults>
</compile_context>

<pallas_src>
import jax
import jax.numpy as jnp
from jax.experimental import pallas as pl
from jax.experimental.pallas import tpu as pltpu


# ---------------------------------------------------------------------------
# Fused Pallas kernel: front MLP -> wavefronted 2-layer LSTM -> output MLP
# ---------------------------------------------------------------------------

def _smp_lstm_fused_kernel(
    feat_ref,                      # (T*B, F)  time-major rows: row = t*B + b   (f32)
    h0_ref, c0_ref,                # (2, B, H)                                  (f32)
    fw1_ref, fb1_ref,              # (F, I1) bf16, (1, I1) f32
    fw2_ref, fb2_ref,              # (I1, In) bf16, (1, In) f32
    wih0_ref, b0_ref,              # (In, 4H) bf16, (1, 4H) f32   gate cols (i,f,g,o)
    wblk_ref, b1_ref,              # (2H, 8H) bf16 = [[Whh0,Wih1],[0,Whh1]], (1,4H) f32
    ow1_ref, ob1_ref,              # (H, H1) bf16, (1, H1) f32
    ow2_ref, ob2_ref,              # (H1, H2) bf16, (1, H2) f32
    ow3_ref, ob3_ref,              # (H2, O) bf16, (1, O) f32
    o_ref,                         # (B, O) f32
):
    TB = feat_ref.shape[0]
    _, B, H = h0_ref.shape
    T = TB // B
    f32 = jnp.float32
    bf16 = jnp.bfloat16

    def mm(act, w_ref):
        # bf16 x bf16 MXU matmul with f32 accumulation.
        return jnp.dot(act.astype(bf16), w_ref[...], preferred_element_type=f32)

    # ---------------- front MLP on all T*B rows at once ---------------------
    x = feat_ref[...]
    a1 = jnp.maximum(mm(x, fw1_ref) + fb1_ref[...], 0.0)   # ReLU; dropout = identity (eval)
    x_in = mm(a1, fw2_ref) + fb2_ref[...]                   # (TB, In)

    # ---------------- hoisted layer-0 input projection -----------------------
    # gx0[t*B:(t+1)*B] is the layer-0 "x" contribution (+ folded bias) at step t.
    gx0 = mm(x_in, wih0_ref) + b0_ref[...]                  # (TB, 4H)
    # Per-step additive slab for the full 8H gate vector:
    #   cols [0,4H)  -> gx0 at the current layer-0 step (zeros for the final
    #                   wavefront step, where layer 0 no longer runs)
    #   cols [4H,8H) -> layer-1 folded bias (b_ih1 + b_hh1)
    adds = jnp.concatenate(
        [jnp.concatenate([gx0, jnp.zeros((B, 4 * H), f32)], axis=0),
         jnp.broadcast_to(b1_ref[...], (TB + B, 4 * H))],
        axis=1)                                             # ((T+1)*B, 8H)

    wblk = wblk_ref[...]                                    # (2H, 8H) bf16

    h0 = h0_ref[0]
    c0 = c0_ref[0]
    h1 = h0_ref[1]
    c1 = c0_ref[1]

    # ---------------- wavefronted recurrence over T+1 steps ------------------
    # At wavefront step s: layer 0 runs its time step s (if s < T) and layer 1 runs
    # its time step s-1 (if s >= 1); both share ONE packed matmul on [h0 | h1].
    # PyTorch gate order within each 4H block: i, f, g(tanh), o.
    # TODO(synk): inter-layer LSTM dropout (p=0.08) is identity in eval mode.
    # TODO(synk): for T >> 32 switch this Python unroll to lax.fori_loop(unroll=2-4).
    for s in range(T + 1):
        hcat = jnp.concatenate([h0, h1], axis=1).astype(bf16)            # (B, 2H)
        gates = (jnp.dot(hcat, wblk, preferred_element_type=f32)
                 + adds[s * B:(s + 1) * B, :])                           # (B, 8H)
        sg = jax.nn.sigmoid(gates)          # one full-width EUP launch
        tg = jnp.tanh(gates)                # one full-width EUP launch
        if s < T:                           # layer 0, time step s
            c0 = sg[:, H:2 * H] * c0 + sg[:, :H] * tg[:, 2 * H:3 * H]
            h0 = sg[:, 3 * H:4 * H] * jnp.tanh(c0)
        if s >= 1:                          # layer 1, time step s-1
            c1 = sg[:, 5 * H:6 * H] * c1 + sg[:, 4 * H:5 * H] * tg[:, 6 * H:7 * H]
            h1 = sg[:, 7 * H:8 * H] * jnp.tanh(c1)

    # h1 is now the top-layer hidden state at the last time step.
    # ---------------- output MLP ---------------------------------------------
    y = jnp.maximum(mm(h1, ow1_ref) + ob1_ref[...], 0.0)
    y = jnp.maximum(mm(y, ow2_ref) + ob2_ref[...], 0.0)
    y = mm(y, ow3_ref) + ob3_ref[...]
    o_ref[...] = y.astype(o_ref.dtype)


# ---------------------------------------------------------------------------
# pallas_call wrapper
# ---------------------------------------------------------------------------

def smp_lstm_fused_call(feat_tm, h0, c0, flat_params):
    args = (feat_tm, h0, c0) + tuple(flat_params)
    TB, F = feat_tm.shape
    _, B, H = h0.shape
    T = TB // B
    (fw1, fb1, fw2, fb2, wih0, b0, wblk, b1,
     ow1, ob1, ow2, ob2, ow3, ob3) = flat_params
    I1 = fw1.shape[1]
    In = fw2.shape[1]
    H1 = ow1.shape[1]
    H2 = ow2.shape[1]
    O = ow3.shape[1]

    flops = (2 * TB * F * I1 + 2 * TB * I1 * In           # front MLP
             + 2 * TB * In * 4 * H                        # hoisted layer-0 input proj
             + 2 * (T + 1) * B * (2 * H) * (8 * H)        # wavefronted recurrence
             + 2 * B * (H * H1 + H1 * H2 + H2 * O))       # output MLP
    transcendentals = (T + 1) * B * (16 * H + 2 * H)      # sigmoid+tanh(8H) + 2*tanh(c)
    bytes_accessed = sum(int(a.size) * a.dtype.itemsize for a in args) + int(B * O * 4)

    # NOTE(v7x): B=2 -> nothing to shard across the second TensorCore; for large
    # production batch, add a leading "parallel" batch grid axis over B blocks.
    return pl.pallas_call(
        _smp_lstm_fused_kernel,
        out_shape=jax.ShapeDtypeStruct((B, O), jnp.float32),
        in_specs=[pl.BlockSpec(memory_space=pltpu.MemorySpace.VMEM)
                  for _ in range(len(args))],
        out_specs=pl.BlockSpec(memory_space=pltpu.MemorySpace.VMEM),
        compiler_params=pltpu.CompilerParams(vmem_limit_bytes=8 * 1024 * 1024),
        cost_estimate=pl.CostEstimate(
            flops=int(flops),
            transcendentals=int(transcendentals),
            bytes_accessed=int(bytes_accessed)),
    )(*args)


@jax.jit
def smp_lstm_forward(feature, h0, c0, flat_params):
    B, T, F = feature.shape
    # Time-major layout (row = t*B + b): the one-time 8 KB transpose in the wrapper
    # makes every per-step gate slab a contiguous static slice inside the kernel.
    feat_tm = feature.transpose(1, 0, 2).reshape(T * B, F)
    return smp_lstm_fused_call(feat_tm, h0, c0, flat_params)


# ---------------------------------------------------------------------------
# Parameters (deterministic, PyTorch-style uniform init; stored as (in, out))
# ---------------------------------------------------------------------------

def _uniform(key, shape, bound):
    return jax.random.uniform(key, shape, jnp.float32, -bound, bound)


def make_params(key, feature_size, inter_size, input_size, hidden_size,
                num_layers, out_h1, out_h2, output_size):
    keys = iter(jax.random.split(key, 64))
    p = {}

    def linear(in_f, out_f):
        b = 1.0 / (in_f ** 0.5)
        w = _uniform(next(keys), (in_f, out_f), b)       # stored transposed: (in, out)
        bias = _uniform(next(keys), (1, out_f), b)
        return w, bias

    p["fin_w"], p["fin_b"] = linear(feature_size, inter_size)
    p["lin_w"], p["lin_b"] = linear(inter_size, input_size)

    p["lstm"] = []
    bnd = 1.0 / (hidden_size ** 0.5)
    for layer in range(num_layers):
        in_sz = input_size if layer == 0 else hidden_size
        wih_t = _uniform(next(keys), (in_sz, 4 * hidden_size), bnd)   # gate cols (i,f,g,o)
        whh_t = _uniform(next(keys), (hidden_size, 4 * hidden_size), bnd)
        b_ih = _uniform(next(keys), (1, 4 * hidden_size), bnd)
        b_hh = _uniform(next(keys), (1, 4 * hidden_size), bnd)
        p["lstm"].append((wih_t, whh_t, b_ih + b_hh))    # fold the two biases
    p["o1_w"], p["o1_b"] = linear(hidden_size, out_h1)
    p["o2_w"], p["o2_b"] = linear(out_h1, out_h2)
    p["o3_w"], p["o3_b"] = linear(out_h2, output_size)
    return p


def prepare_kernel_params(p):
    """Flatten params for the fused kernel.

    Gate columns stay in native PyTorch order (i, f, g, o).  The two recurrent /
    inter-layer weights are packed into the wavefront block matrix
        W_blk = [[W_hh0, W_ih1], [0, W_hh1]]   of shape (2H, 8H),
    and all matmul weights are cast to bf16 (biases stay f32).
    """
    assert len(p["lstm"]) == 2, "fused kernel is specialized for num_layers=2"
    bf16 = jnp.bfloat16
    wih0, whh0, b0 = p["lstm"][0]
    wih1, whh1, b1 = p["lstm"][1]
    H = whh0.shape[0]
    wblk = jnp.concatenate(
        [jnp.concatenate([whh0, wih1], axis=1),
         jnp.concatenate([jnp.zeros((H, 4 * H), jnp.float32), whh1], axis=1)],
        axis=0)                                           # (2H, 8H)
    return (
        p["fin_w"].astype(bf16), p["fin_b"],
        p["lin_w"].astype(bf16), p["lin_b"],
        wih0.astype(bf16), b0,
        wblk.astype(bf16), b1,
        p["o1_w"].astype(bf16), p["o1_b"],
        p["o2_w"].astype(bf16), p["o2_b"],
        p["o3_w"].astype(bf16), p["o3_b"],
    )


# ---------------------------------------------------------------------------
# Pure-JAX f32 reference (PyTorch gate order) for a correctness cross-check
# ---------------------------------------------------------------------------

def smp_lstm_reference(feature, h0, c0, p):
    B, T, F = feature.shape
    x = feature.reshape(B * T, F)
    x = jnp.maximum(x @ p["fin_w"] + p["fin_b"], 0.0)
    x = x @ p["lin_w"] + p["lin_b"]
    h_seq = x.reshape(B, T, -1).transpose(1, 0, 2)          # (T, B, In)
    for layer, (wih_t, whh_t, bias) in enumerate(p["lstm"]):
        H = whh_t.shape[0]
        h, c = h0[layer], c0[layer]
        outs = []
        for t in range(T):
            gates = h_seq[t] @ wih_t + h @ whh_t + bias
            i_g = jax.nn.sigmoid(gates[:, 0 * H:1 * H])
            f_g = jax.nn.sigmoid(gates[:, 1 * H:2 * H])
            g_g = jnp.tanh(gates[:, 2 * H:3 * H])
            o_g = jax.nn.sigmoid(gates[:, 3 * H:4 * H])
            c = f_g * c + i_g * g_g
            h = o_g * jnp.tanh(c)
            outs.append(h)
        h_seq = jnp.stack(outs, axis=0)
    last = h_seq[-1]
    y = jnp.maximum(last @ p["o1_w"] + p["o1_b"], 0.0)
    y = jnp.maximum(y @ p["o2_w"] + p["o2_b"], 0.0)
    return y @ p["o3_w"] + p["o3_b"]


# ---------------------------------------------------------------------------
# Main
# ---------------------------------------------------------------------------

if __name__ == "__main__":
    # small shapes consistent with the module's forward
    B, T = 2, 8
    feature_size = 128
    inter_size = 64
    input_size = 32
    hidden_size = 32
    num_layers = 2
    out_h1, out_h2, output_size = 32, 16, 1

    key = jax.random.PRNGKey(0)
    k_feat, k_h0, k_c0, k_params = jax.random.split(key, 4)

    feature = jax.random.normal(k_feat, (B, T, feature_size), jnp.float32)
    h0 = jax.random.normal(k_h0, (num_layers, B, hidden_size), jnp.float32)
    c0 = jax.random.normal(k_c0, (num_layers, B, hidden_size), jnp.float32)

    params = make_params(k_params, feature_size, inter_size, input_size,
                         hidden_size, num_layers, out_h1, out_h2, output_size)
    flat_params = prepare_kernel_params(params)

    y = smp_lstm_forward(feature, h0, c0, flat_params)
    y = jax.block_until_ready(y)

    assert y.shape == (B, output_size), y.shape
    assert bool(jnp.all(jnp.isfinite(y)))

    # cross-check against the pure-JAX f32 reference forward pass.
    # Tolerance is 2e-2 because the kernel deliberately uses bf16 MXU operands
    # (f32 accumulation) per the performance guidance.
    y_ref = smp_lstm_reference(feature, h0, c0, params)
    assert bool(jnp.allclose(y, y_ref, rtol=2e-2, atol=2e-2)), (y, y_ref)

    print("KERNEL_OK")
</pallas_src>

<mosaic_0001>
module attributes {stable_mosaic.version = 11 : i64} {
  func.func @_smp_lstm_fused_kernel(%arg0: memref<16x128xf32, #tpu.memory_space<vmem>>, %arg1: memref<2x2x32xf32, #tpu.memory_space<vmem>>, %arg2: memref<2x2x32xf32, #tpu.memory_space<vmem>>, %arg3: memref<128x64xbf16, #tpu.memory_space<vmem>>, %arg4: memref<1x64xf32, #tpu.memory_space<vmem>>, %arg5: memref<64x32xbf16, #tpu.memory_space<vmem>>, %arg6: memref<1x32xf32, #tpu.memory_space<vmem>>, %arg7: memref<32x128xbf16, #tpu.memory_space<vmem>>, %arg8: memref<1x128xf32, #tpu.memory_space<vmem>>, %arg9: memref<64x256xbf16, #tpu.memory_space<vmem>>, %arg10: memref<1x128xf32, #tpu.memory_space<vmem>>, %arg11: memref<32x32xbf16, #tpu.memory_space<vmem>>, %arg12: memref<1x32xf32, #tpu.memory_space<vmem>>, %arg13: memref<32x16xbf16, #tpu.memory_space<vmem>>, %arg14: memref<1x16xf32, #tpu.memory_space<vmem>>, %arg15: memref<16x1xbf16, #tpu.memory_space<vmem>>, %arg16: memref<1x1xf32, #tpu.memory_space<vmem>>, %arg17: memref<2x1xf32, #tpu.memory_space<vmem>>) attributes {dimension_semantics = [], scalar_prefetch = 0 : i64, scratch_operands = 0 : i64, tpu.core_type = #tpu.core_type<tc>} {
    %c0 = arith.constant 0 : index
    %c0_0 = arith.constant 0 : index
    %0 = vector.load %arg0[%c0, %c0_0] : memref<16x128xf32, #tpu.memory_space<vmem>>, vector<16x128xf32>
    %1 = arith.truncf %0 : vector<16x128xf32> to vector<16x128xbf16>
    %c0_1 = arith.constant 0 : index
    %c0_2 = arith.constant 0 : index
    %2 = vector.load %arg3[%c0_1, %c0_2] : memref<128x64xbf16, #tpu.memory_space<vmem>>, vector<128x64xbf16>
    %cst = arith.constant dense<0.000000e+00> : vector<16x64xf32>
    %3 = tpu.matmul %1, %2, %cst {dimension_numbers = #tpu.dot_dimension_numbers<[1], [0], [0], [1], [0, 0, 1, 1], [], []>} : vector<16x128xbf16>, vector<128x64xbf16>, vector<16x64xf32> -> vector<16x64xf32>
    %c0_3 = arith.constant 0 : index
    %c0_4 = arith.constant 0 : index
    %4 = vector.load %arg4[%c0_3, %c0_4] : memref<1x64xf32, #tpu.memory_space<vmem>>, vector<1x64xf32>
    %5 = vector.broadcast %4 : vector<1x64xf32> to vector<16x64xf32>
    %6 = arith.addf %3, %5 : vector<16x64xf32>
    %cst_5 = arith.constant 0.000000e+00 : f32
    %7 = vector.broadcast %cst_5 : f32 to vector<16x64xf32>
    %8 = arith.maximumf %6, %7 : vector<16x64xf32>
    %9 = arith.truncf %8 : vector<16x64xf32> to vector<16x64xbf16>
    %c0_6 = arith.constant 0 : index
    %c0_7 = arith.constant 0 : index
    %10 = vector.load %arg5[%c0_6, %c0_7] : memref<64x32xbf16, #tpu.memory_space<vmem>>, vector<64x32xbf16>
    %cst_8 = arith.constant dense<0.000000e+00> : vector<16x32xf32>
    %11 = tpu.matmul %9, %10, %cst_8 {dimension_numbers = #tpu.dot_dimension_numbers<[1], [0], [0], [1], [0, 0, 1, 1], [], []>} : vector<16x64xbf16>, vector<64x32xbf16>, vector<16x32xf32> -> vector<16x32xf32>
    %c0_9 = arith.constant 0 : index
    %c0_10 = arith.constant 0 : index
    %12 = vector.load %arg6[%c0_9, %c0_10] : memref<1x32xf32, #tpu.memory_space<vmem>>, vector<1x32xf32>
    %13 = vector.broadcast %12 : vector<1x32xf32> to vector<16x32xf32>
    %14 = arith.addf %11, %13 : vector<16x32xf32>
    %15 = arith.truncf %14 : vector<16x32xf32> to vector<16x32xbf16>
    %c0_11 = arith.constant 0 : index
    %c0_12 = arith.constant 0 : index
    %16 = vector.load %arg7[%c0_11, %c0_12] : memref<32x128xbf16, #tpu.memory_space<vmem>>, vector<32x128xbf16>
    %cst_13 = arith.constant dense<0.000000e+00> : vector<16x128xf32>
    %17 = tpu.matmul %15, %16, %cst_13 {dimension_numbers = #tpu.dot_dimension_numbers<[1], [0], [0], [1], [0, 0, 1, 1], [], []>} : vector<16x32xbf16>, vector<32x128xbf16>, vector<16x128xf32> -> vector<16x128xf32>
    %c0_14 = arith.constant 0 : index
    %c0_15 = arith.constant 0 : index
    %18 = vector.load %arg8[%c0_14, %c0_15] : memref<1x128xf32, #tpu.memory_space<vmem>>, vector<1x128xf32>
    %19 = vector.broadcast %18 : vector<1x128xf32> to vector<16x128xf32>
    %20 = arith.addf %17, %19 : vector<16x128xf32>
    %cst_16 = arith.constant 0.000000e+00 : f32
    %21 = vector.broadcast %cst_16 : f32 to vector<2x128xf32>
    %22 = tpu.concatenate %20, %21 in 0 : vector<16x128xf32>, vector<2x128xf32> -> vector<18x128xf32>
    %c0_17 = arith.constant 0 : index
    %c0_18 = arith.constant 0 : index
    %23 = vector.load %arg10[%c0_17, %c0_18] : memref<1x128xf32, #tpu.memory_space<vmem>>, vector<1x128xf32>
    %24 = vector.shape_cast %23 : vector<1x128xf32> to vector<1x128xf32>
    %25 = vector.broadcast %24 : vector<1x128xf32> to vector<18x128xf32>
    %26 = tpu.concatenate %22, %25 in 1 : vector<18x128xf32>, vector<18x128xf32> -> vector<18x256xf32>
    %c0_19 = arith.constant 0 : index
    %c0_20 = arith.constant 0 : index
    %27 = vector.load %arg9[%c0_19, %c0_20] : memref<64x256xbf16, #tpu.memory_space<vmem>>, vector<64x256xbf16>
    %c0_21 = arith.constant 0 : index
    %c0_22 = arith.constant 0 : index
    %c0_23 = arith.constant 0 : index
    %28 = vector.load %arg1[%c0_21, %c0_22, %c0_23] : memref<2x2x32xf32, #tpu.memory_space<vmem>>, vector<1x2x32xf32>
    %29 = vector.shape_cast %28 : vector<1x2x32xf32> to vector<2x32xf32>
    %c0_24 = arith.constant 0 : index
    %c0_25 = arith.constant 0 : index
    %c0_26 = arith.constant 0 : index
    %30 = vector.load %arg2[%c0_24, %c0_25, %c0_26] : memref<2x2x32xf32, #tpu.memory_space<vmem>>, vector<1x2x32xf32>
    %31 = vector.shape_cast %30 : vector<1x2x32xf32> to vector<2x32xf32>
    %c1 = arith.constant 1 : index
    %c0_27 = arith.constant 0 : index
    %c0_28 = arith.constant 0 : index
    %32 = vector.load %arg1[%c1, %c0_27, %c0_28] : memref<2x2x32xf32, #tpu.memory_space<vmem>>, vector<1x2x32xf32>
    %33 = vector.shape_cast %32 : vector<1x2x32xf32> to vector<2x32xf32>
    %c1_29 = arith.constant 1 : index
    %c0_30 = arith.constant 0 : index
    %c0_31 = arith.constant 0 : index
    %34 = vector.load %arg2[%c1_29, %c0_30, %c0_31] : memref<2x2x32xf32, #tpu.memory_space<vmem>>, vector<1x2x32xf32>
    %35 = vector.shape_cast %34 : vector<1x2x32xf32> to vector<2x32xf32>
    %36 = tpu.concatenate %29, %33 in 1 : vector<2x32xf32>, vector<2x32xf32> -> vector<2x64xf32>
    %37 = arith.truncf %36 : vector<2x64xf32> to vector<2x64xbf16>
    %cst_32 = arith.constant dense<0.000000e+00> : vector<2x256xf32>
    %38 = tpu.matmul %37, %27, %cst_32 {dimension_numbers = #tpu.dot_dimension_numbers<[1], [0], [0], [1], [0, 0, 1, 1], [], []>} : vector<2x64xbf16>, vector<64x256xbf16>, vector<2x256xf32> -> vector<2x256xf32>
    %39 = vector.extract_strided_slice %26 {offsets = [0, 0], sizes = [2, 256], strides = [1, 1]} : vector<18x256xf32> to vector<2x256xf32>
    %40 = arith.addf %38, %39 : vector<2x256xf32>
    %41 = arith.negf %40 : vector<2x256xf32>
    %42 = math.exp %41 : vector<2x256xf32>
    %cst_33 = arith.constant 1.000000e+00 : f32
    %43 = vector.broadcast %cst_33 : f32 to vector<2x256xf32>
    %44 = arith.addf %43, %42 : vector<2x256xf32>
    %45 = arith.divf %43, %44 : vector<2x256xf32>
    %46 = math.tanh %40 : vector<2x256xf32>
    %47 = vector.extract_strided_slice %45 {offsets = [0, 32], sizes = [2, 32], strides = [1, 1]} : vector<2x256xf32> to vector<2x32xf32>
    %48 = arith.mulf %47, %31 : vector<2x32xf32>
    %49 = vector.extract_strided_slice %45 {offsets = [0, 0], sizes = [2, 32], strides = [1, 1]} : vector<2x256xf32> to vector<2x32xf32>
    %50 = vector.extract_strided_slice %46 {offsets = [0, 64], sizes = [2, 32], strides = [1, 1]} : vector<2x256xf32> to vector<2x32xf32>
    %51 = arith.mulf %49, %50 : vector<2x32xf32>
    %52 = arith.addf %48, %51 : vector<2x32xf32>
    %53 = vector.extract_strided_slice %45 {offsets = [0, 96], sizes = [2, 32], strides = [1, 1]} : vector<2x256xf32> to vector<2x32xf32>
    %54 = math.tanh %52 : vector<2x32xf32>
    %55 = arith.mulf %53, %54 : vector<2x32xf32>
    %56 = tpu.concatenate %55, %33 in 1 : vector<2x32xf32>, vector<2x32xf32> -> vector<2x64xf32>
    %57 = arith.truncf %56 : vector<2x64xf32> to vector<2x64xbf16>
    %cst_34 = arith.constant dense<0.000000e+00> : vector<2x256xf32>
    %58 = tpu.matmul %57, %27, %cst_34 {dimension_numbers = #tpu.dot_dimension_numbers<[1], [0], [0], [1], [0, 0, 1, 1], [], []>} : vector<2x64xbf16>, vector<64x256xbf16>, vector<2x256xf32> -> vector<2x256xf32>
    %59 = vector.extract_strided_slice %26 {offsets = [2, 0], sizes = [2, 256], strides = [1, 1]} : vector<18x256xf32> to vector<2x256xf32>
    %60 = arith.addf %58, %59 : vector<2x256xf32>
    %61 = arith.negf %60 : vector<2x256xf32>
    %62 = math.exp %61 : vector<2x256xf32>
    %cst_35 = arith.constant 1.000000e+00 : f32
    %63 = vector.broadcast %cst_35 : f32 to vector<2x256xf32>
    %64 = arith.addf %63, %62 : vector<2x256xf32>
    %65 = arith.divf %63, %64 : vector<2x256xf32>
    %66 = math.tanh %60 : vector<2x256xf32>
    %67 = vector.extract_strided_slice %65 {offsets = [0, 32], sizes = [2, 32], strides = [1, 1]} : vector<2x256xf32> to vector<2x32xf32>
    %68 = arith.mulf %67, %52 : vector<2x32xf32>
    %69 = vector.extract_strided_slice %65 {offsets = [0, 0], sizes = [2, 32], strides = [1, 1]} : vector<2x256xf32> to vector<2x32xf32>
    %70 = vector.extract_strided_slice %66 {offsets = [0, 64], sizes = [2, 32], strides = [1, 1]} : vector<2x256xf32> to vector<2x32xf32>
    %71 = arith.mulf %69, %70 : vector<2x32xf32>
    %72 = arith.addf %68, %71 : vector<2x32xf32>
    %73 = vector.extract_strided_slice %65 {offsets = [0, 96], sizes = [2, 32], strides = [1, 1]} : vector<2x256xf32> to vector<2x32xf32>
    %74 = math.tanh %72 : vector<2x32xf32>
    %75 = arith.mulf %73, %74 : vector<2x32xf32>
    %76 = vector.extract_strided_slice %65 {offsets = [0, 160], sizes = [2, 32], strides = [1, 1]} : vector<2x256xf32> to vector<2x32xf32>
    %77 = arith.mulf %76, %35 : vector<2x32xf32>
    %78 = vector.extract_strided_slice %65 {offsets = [0, 128], sizes = [2, 32], strides = [1, 1]} : vector<2x256xf32> to vector<2x32xf32>
    %79 = vector.extract_strided_slice %66 {offsets = [0, 192], sizes = [2, 32], strides = [1, 1]} : vector<2x256xf32> to vector<2x32xf32>
    %80 = arith.mulf %78, %79 : vector<2x32xf32>
    %81 = arith.addf %77, %80 : vector<2x32xf32>
    %82 = vector.extract_strided_slice %65 {offsets = [0, 224], sizes = [2, 32], strides = [1, 1]} : vector<2x256xf32> to vector<2x32xf32>
    %83 = math.tanh %81 : vector<2x32xf32>
    %84 = arith.mulf %82, %83 : vector<2x32xf32>
    %85 = tpu.concatenate %75, %84 in 1 : vector<2x32xf32>, vector<2x32xf32> -> vector<2x64xf32>
    %86 = arith.truncf %85 : vector<2x64xf32> to vector<2x64xbf16>
    %cst_36 = arith.constant dense<0.000000e+00> : vector<2x256xf32>
    %87 = tpu.matmul %86, %27, %cst_36 {dimension_numbers = #tpu.dot_dimension_numbers<[1], [0], [0], [1], [0, 0, 1, 1], [], []>} : vector<2x64xbf16>, vector<64x256xbf16>, vector<2x256xf32> -> vector<2x256xf32>
    %88 = vector.extract_strided_slice %26 {offsets = [4, 0], sizes = [2, 256], strides = [1, 1]} : vector<18x256xf32> to vector<2x256xf32>
    %89 = arith.addf %87, %88 : vector<2x256xf32>
    %90 = arith.negf %89 : vector<2x256xf32>
    %91 = math.exp %90 : vector<2x256xf32>
    %cst_37 = arith.constant 1.000000e+00 : f32
    %92 = vector.broadcast %cst_37 : f32 to vector<2x256xf32>
    %93 = arith.addf %92, %91 : vector<2x256xf32>
    %94 = arith.divf %92, %93 : vector<2x256xf32>
    %95 = math.tanh %89 : vector<2x256xf32>
    %96 = vector.extract_strided_slice %94 {offsets = [0, 32], sizes = [2, 32], strides = [1, 1]} : vector<2x256xf32> to vector<2x32xf32>
    %97 = arith.mulf %96, %72 : vector<2x32xf32>
    %98 = vector.extract_strided_slice %94 {offsets = [0, 0], sizes = [2, 32], strides = [1, 1]} : vector<2x256xf32> to vector<2x32xf32>
    %99 = vector.extract_strided_slice %95 {offsets = [0, 64], sizes = [2, 32], strides = [1, 1]} : vector<2x256xf32> to vector<2x32xf32>
    %100 = arith.mulf %98, %99 : vector<2x32xf32>
    %101 = arith.addf %97, %100 : vector<2x32xf32>
    %102 = vector.extract_strided_slice %94 {offsets = [0, 96], sizes = [2, 32], strides = [1, 1]} : vector<2x256xf32> to vector<2x32xf32>
    %103 = math.tanh %101 : vector<2x32xf32>
    %104 = arith.mulf %102, %103 : vector<2x32xf32>
    %105 = vector.extract_strided_slice %94 {offsets = [0, 160], sizes = [2, 32], strides = [1, 1]} : vector<2x256xf32> to vector<2x32xf32>
    %106 = arith.mulf %105, %81 : vector<2x32xf32>
    %107 = vector.extract_strided_slice %94 {offsets = [0, 128], sizes = [2, 32], strides = [1, 1]} : vector<2x256xf32> to vector<2x32xf32>
    %108 = vector.extract_strided_slice %95 {offsets = [0, 192], sizes = [2, 32], strides = [1, 1]} : vector<2x256xf32> to vector<2x32xf32>
    %109 = arith.mulf %107, %108 : vector<2x32xf32>
    %110 = arith.addf %106, %109 : vector<2x32xf32>
    %111 = vector.extract_strided_slice %94 {offsets = [0, 224], sizes = [2, 32], strides = [1, 1]} : vector<2x256xf32> to vector<2x32xf32>
    %112 = math.tanh %110 : vector<2x32xf32>
    %113 = arith.mulf %111, %112 : vector<2x32xf32>
    %114 = tpu.concatenate %104, %113 in 1 : vector<2x32xf32>, vector<2x32xf32> -> vector<2x64xf32>
    %115 = arith.truncf %114 : vector<2x64xf32> to vector<2x64xbf16>
    %cst_38 = arith.constant dense<0.000000e+00> : vector<2x256xf32>
    %116 = tpu.matmul %115, %27, %cst_38 {dimension_numbers = #tpu.dot_dimension_numbers<[1], [0], [0], [1], [0, 0, 1, 1], [], []>} : vector<2x64xbf16>, vector<64x256xbf16>, vector<2x256xf32> -> vector<2x256xf32>
    %117 = vector.extract_strided_slice %26 {offsets = [6, 0], sizes = [2, 256], strides = [1, 1]} : vector<18x256xf32> to vector<2x256xf32>
    %118 = arith.addf %116, %117 : vector<2x256xf32>
    %119 = arith.negf %118 : vector<2x256xf32>
    %120 = math.exp %119 : vector<2x256xf32>
    %cst_39 = arith.constant 1.000000e+00 : f32
    %121 = vector.broadcast %cst_39 : f32 to vector<2x256xf32>
    %122 = arith.addf %121, %120 : vector<2x256xf32>
    %123 = arith.divf %121, %122 : vector<2x256xf32>
    %124 = math.tanh %118 : vector<2x256xf32>
    %125 = vector.extract_strided_slice %123 {offsets = [0, 32], sizes = [2, 32], strides = [1, 1]} : vector<2x256xf32> to vector<2x32xf32>
    %126 = arith.mulf %125, %101 : vector<2x32xf32>
    %127 = vector.extract_strided_slice %123 {offsets = [0, 0], sizes = [2, 32], strides = [1, 1]} : vector<2x256xf32> to vector<2x32xf32>
    %128 = vector.extract_strided_slice %124 {offsets = [0, 64], sizes = [2, 32], strides = [1, 1]} : vector<2x256xf32> to vector<2x32xf32>
    %129 = arith.mulf %127, %128 : vector<2x32xf32>
    %130 = arith.addf %126, %129 : vector<2x32xf32>
    %131 = vector.extract_strided_slice %123 {offsets = [0, 96], sizes = [2, 32], strides = [1, 1]} : vector<2x256xf32> to vector<2x32xf32>
    %132 = math.tanh %130 : vector<2x32xf32>
    %133 = arith.mulf %131, %132 : vector<2x32xf32>
    %134 = vector.extract_strided_slice %123 {offsets = [0, 160], sizes = [2, 32], strides = [1, 1]} : vector<2x256xf32> to vector<2x32xf32>
    %135 = arith.mulf %134, %110 : vector<2x32xf32>
    %136 = vector.extract_strided_slice %123 {offsets = [0, 128], sizes = [2, 32], strides = [1, 1]} : vector<2x256xf32> to vector<2x32xf32>
    %137 = vector.extract_strided_slice %124 {offsets = [0, 192], sizes = [2, 32], strides = [1, 1]} : vector<2x256xf32> to vector<2x32xf32>
    %138 = arith.mulf %136, %137 : vector<2x32xf32>
    %139 = arith.addf %135, %138 : vector<2x32xf32>
    %140 = vector.extract_strided_slice %123 {offsets = [0, 224], sizes = [2, 32], strides = [1, 1]} : vector<2x256xf32> to vector<2x32xf32>
    %141 = math.tanh %139 : vector<2x32xf32>
    %142 = arith.mulf %140, %141 : vector<2x32xf32>
    %143 = tpu.concatenate %133, %142 in 1 : vector<2x32xf32>, vector<2x32xf32> -> vector<2x64xf32>
    %144 = arith.truncf %143 : vector<2x64xf32> to vector<2x64xbf16>
    %cst_40 = arith.constant dense<0.000000e+00> : vector<2x256xf32>
    %145 = tpu.matmul %144, %27, %cst_40 {dimension_numbers = #tpu.dot_dimension_numbers<[1], [0], [0], [1], [0, 0, 1, 1], [], []>} : vector<2x64xbf16>, vector<64x256xbf16>, vector<2x256xf32> -> vector<2x256xf32>
    %146 = vector.extract_strided_slice %26 {offsets = [8, 0], sizes = [2, 256], strides = [1, 1]} : vector<18x256xf32> to vector<2x256xf32>
    %147 = arith.addf %145, %146 : vector<2x256xf32>
    %148 = arith.negf %147 : vector<2x256xf32>
    %149 = math.exp %148 : vector<2x256xf32>
    %cst_41 = arith.constant 1.000000e+00 : f32
    %150 = vector.broadcast %cst_41 : f32 to vector<2x256xf32>
    %151 = arith.addf %150, %149 : vector<2x256xf32>
    %152 = arith.divf %150, %151 : vector<2x256xf32>
    %153 = math.tanh %147 : vector<2x256xf32>
    %154 = vector.extract_strided_slice %152 {offsets = [0, 32], sizes = [2, 32], strides = [1, 1]} : vector<2x256xf32> to vector<2x32xf32>
    %155 = arith.mulf %154, %130 : vector<2x32xf32>
    %156 = vector.extract_strided_slice %152 {offsets = [0, 0], sizes = [2, 32], strides = [1, 1]} : vector<2x256xf32> to vector<2x32xf32>
    %157 = vector.extract_strided_slice %153 {offsets = [0, 64], sizes = [2, 32], strides = [1, 1]} : vector<2x256xf32> to vector<2x32xf32>
    %158 = arith.mulf %156, %157 : vector<2x32xf32>
    %159 = arith.addf %155, %158 : vector<2x32xf32>
    %160 = vector.extract_strided_slice %152 {offsets = [0, 96], sizes = [2, 32], strides = [1, 1]} : vector<2x256xf32> to vector<2x32xf32>
    %161 = math.tanh %159 : vector<2x32xf32>
    %162 = arith.mulf %160, %161 : vector<2x32xf32>
    %163 = vector.extract_strided_slice %152 {offsets = [0, 160], sizes = [2, 32], strides = [1, 1]} : vector<2x256xf32> to vector<2x32xf32>
    %164 = arith.mulf %163, %139 : vector<2x32xf32>
    %165 = vector.extract_strided_slice %152 {offsets = [0, 128], sizes = [2, 32], strides = [1, 1]} : vector<2x256xf32> to vector<2x32xf32>
    %166 = vector.extract_strided_slice %153 {offsets = [0, 192], sizes = [2, 32], strides = [1, 1]} : vector<2x256xf32> to vector<2x32xf32>
    %167 = arith.mulf %165, %166 : vector<2x32xf32>
    %168 = arith.addf %164, %167 : vector<2x32xf32>
    %169 = vector.extract_strided_slice %152 {offsets = [0, 224], sizes = [2, 32], strides = [1, 1]} : vector<2x256xf32> to vector<2x32xf32>
    %170 = math.tanh %168 : vector<2x32xf32>
    %171 = arith.mulf %169, %170 : vector<2x32xf32>
    %172 = tpu.concatenate %162, %171 in 1 : vector<2x32xf32>, vector<2x32xf32> -> vector<2x64xf32>
    %173 = arith.truncf %172 : vector<2x64xf32> to vector<2x64xbf16>
    %cst_42 = arith.constant dense<0.000000e+00> : vector<2x256xf32>
    %174 = tpu.matmul %173, %27, %cst_42 {dimension_numbers = #tpu.dot_dimension_numbers<[1], [0], [0], [1], [0, 0, 1, 1], [], []>} : vector<2x64xbf16>, vector<64x256xbf16>, vector<2x256xf32> -> vector<2x256xf32>
    %175 = vector.extract_strided_slice %26 {offsets = [10, 0], sizes = [2, 256], strides = [1, 1]} : vector<18x256xf32> to vector<2x256xf32>
    %176 = arith.addf %174, %175 : vector<2x256xf32>
    %177 = arith.negf %176 : vector<2x256xf32>
    %178 = math.exp %177 : vector<2x256xf32>
    %cst_43 = arith.constant 1.000000e+00 : f32
    %179 = vector.broadcast %cst_43 : f32 to vector<2x256xf32>
    %180 = arith.addf %179, %178 : vector<2x256xf32>
    %181 = arith.divf %179, %180 : vector<2x256xf32>
    %182 = math.tanh %176 : vector<2x256xf32>
    %183 = vector.extract_strided_slice %181 {offsets = [0, 32], sizes = [2, 32], strides = [1, 1]} : vector<2x256xf32> to vector<2x32xf32>
    %184 = arith.mulf %183, %159 : vector<2x32xf32>
    %185 = vector.extract_strided_slice %181 {offsets = [0, 0], sizes = [2, 32], strides = [1, 1]} : vector<2x256xf32> to vector<2x32xf32>
    %186 = vector.extract_strided_slice %182 {offsets = [0, 64], sizes = [2, 32], strides = [1, 1]} : vector<2x256xf32> to vector<2x32xf32>
    %187 = arith.mulf %185, %186 : vector<2x32xf32>
    %188 = arith.addf %184, %187 : vector<2x32xf32>
    %189 = vector.extract_strided_slice %181 {offsets = [0, 96], sizes = [2, 32], strides = [1, 1]} : vector<2x256xf32> to vector<2x32xf32>
    %190 = math.tanh %188 : vector<2x32xf32>
    %191 = arith.mulf %189, %190 : vector<2x32xf32>
    %192 = vector.extract_strided_slice %181 {offsets = [0, 160], sizes = [2, 32], strides = [1, 1]} : vector<2x256xf32> to vector<2x32xf32>
    %193 = arith.mulf %192, %168 : vector<2x32xf32>
    %194 = vector.extract_strided_slice %181 {offsets = [0, 128], sizes = [2, 32], strides = [1, 1]} : vector<2x256xf32> to vector<2x32xf32>
    %195 = vector.extract_strided_slice %182 {offsets = [0, 192], sizes = [2, 32], strides = [1, 1]} : vector<2x256xf32> to vector<2x32xf32>
    %196 = arith.mulf %194, %195 : vector<2x32xf32>
    %197 = arith.addf %193, %196 : vector<2x32xf32>
    %198 = vector.extract_strided_slice %181 {offsets = [0, 224], sizes = [2, 32], strides = [1, 1]} : vector<2x256xf32> to vector<2x32xf32>
    %199 = math.tanh %197 : vector<2x32xf32>
    %200 = arith.mulf %198, %199 : vector<2x32xf32>
    %201 = tpu.concatenate %191, %200 in 1 : vector<2x32xf32>, vector<2x32xf32> -> vector<2x64xf32>
    %202 = arith.truncf %201 : vector<2x64xf32> to vector<2x64xbf16>
    %cst_44 = arith.constant dense<0.000000e+00> : vector<2x256xf32>
    %203 = tpu.matmul %202, %27, %cst_44 {dimension_numbers = #tpu.dot_dimension_numbers<[1], [0], [0], [1], [0, 0, 1, 1], [], []>} : vector<2x64xbf16>, vector<64x256xbf16>, vector<2x256xf32> -> vector<2x256xf32>
    %204 = vector.extract_strided_slice %26 {offsets = [12, 0], sizes = [2, 256], strides = [1, 1]} : vector<18x256xf32> to vector<2x256xf32>
    %205 = arith.addf %203, %204 : vector<2x256xf32>
    %206 = arith.negf %205 : vector<2x256xf32>
    %207 = math.exp %206 : vector<2x256xf32>
    %cst_45 = arith.constant 1.000000e+00 : f32
    %208 = vector.broadcast %cst_45 : f32 to vector<2x256xf32>
    %209 = arith.addf %208, %207 : vector<2x256xf32>
    %210 = arith.divf %208, %209 : vector<2x256xf32>
    %211 = math.tanh %205 : vector<2x256xf32>
    %212 = vector.extract_strided_slice %210 {offsets = [0, 32], sizes = [2, 32], strides = [1, 1]} : vector<2x256xf32> to vector<2x32xf32>
    %213 = arith.mulf %212, %188 : vector<2x32xf32>
    %214 = vector.extract_strided_slice %210 {offsets = [0, 0], sizes = [2, 32], strides = [1, 1]} : vector<2x256xf32> to vector<2x32xf32>
    %215 = vector.extract_strided_slice %211 {offsets = [0, 64], sizes = [2, 32], strides = [1, 1]} : vector<2x256xf32> to vector<2x32xf32>
    %216 = arith.mulf %214, %215 : vector<2x32xf32>
    %217 = arith.addf %213, %216 : vector<2x32xf32>
    %218 = vector.extract_strided_slice %210 {offsets = [0, 96], sizes = [2, 32], strides = [1, 1]} : vector<2x256xf32> to vector<2x32xf32>
    %219 = math.tanh %217 : vector<2x32xf32>
    %220 = arith.mulf %218, %219 : vector<2x32xf32>
    %221 = vector.extract_strided_slice %210 {offsets = [0, 160], sizes = [2, 32], strides = [1, 1]} : vector<2x256xf32> to vector<2x32xf32>
    %222 = arith.mulf %221, %197 : vector<2x32xf32>
    %223 = vector.extract_strided_slice %210 {offsets = [0, 128], sizes = [2, 32], strides = [1, 1]} : vector<2x256xf32> to vector<2x32xf32>
    %224 = vector.extract_strided_slice %211 {offsets = [0, 192], sizes = [2, 32], strides = [1, 1]} : vector<2x256xf32> to vector<2x32xf32>
    %225 = arith.mulf %223, %224 : vector<2x32xf32>
    %226 = arith.addf %222, %225 : vector<2x32xf32>
    %227 = vector.extract_strided_slice %210 {offsets = [0, 224], sizes = [2, 32], strides = [1, 1]} : vector<2x256xf32> to vector<2x32xf32>
    %228 = math.tanh %226 : vector<2x32xf32>
    %229 = arith.mulf %227, %228 : vector<2x32xf32>
    %230 = tpu.concatenate %220, %229 in 1 : vector<2x32xf32>, vector<2x32xf32> -> vector<2x64xf32>
    %231 = arith.truncf %230 : vector<2x64xf32> to vector<2x64xbf16>
    %cst_46 = arith.constant dense<0.000000e+00> : vector<2x256xf32>
    %232 = tpu.matmul %231, %27, %cst_46 {dimension_numbers = #tpu.dot_dimension_numbers<[1], [0], [0], [1], [0, 0, 1, 1], [], []>} : vector<2x64xbf16>, vector<64x256xbf16>, vector<2x256xf32> -> vector<2x256xf32>
    %233 = vector.extract_strided_slice %26 {offsets = [14, 0], sizes = [2, 256], strides = [1, 1]} : vector<18x256xf32> to vector<2x256xf32>
    %234 = arith.addf %232, %233 : vector<2x256xf32>
    %235 = arith.negf %234 : vector<2x256xf32>
    %236 = math.exp %235 : vector<2x256xf32>
    %cst_47 = arith.constant 1.000000e+00 : f32
    %237 = vector.broadcast %cst_47 : f32 to vector<2x256xf32>
    %238 = arith.addf %237, %236 : vector<2x256xf32>
    %239 = arith.divf %237, %238 : vector<2x256xf32>
    %240 = math.tanh %234 : vector<2x256xf32>
    %241 = vector.extract_strided_slice %239 {offsets = [0, 32], sizes = [2, 32], strides = [1, 1]} : vector<2x256xf32> to vector<2x32xf32>
    %242 = arith.mulf %241, %217 : vector<2x32xf32>
    %243 = vector.extract_strided_slice %239 {offsets = [0, 0], sizes = [2, 32], strides = [1, 1]} : vector<2x256xf32> to vector<2x32xf32>
    %244 = vector.extract_strided_slice %240 {offsets = [0, 64], sizes = [2, 32], strides = [1, 1]} : vector<2x256xf32> to vector<2x32xf32>
    %245 = arith.mulf %243, %244 : vector<2x32xf32>
    %246 = arith.addf %242, %245 : vector<2x32xf32>
    %247 = vector.extract_strided_slice %239 {offsets = [0, 96], sizes = [2, 32], strides = [1, 1]} : vector<2x256xf32> to vector<2x32xf32>
    %248 = math.tanh %246 : vector<2x32xf32>
    %249 = arith.mulf %247, %248 : vector<2x32xf32>
    %250 = vector.extract_strided_slice %239 {offsets = [0, 160], sizes = [2, 32], strides = [1, 1]} : vector<2x256xf32> to vector<2x32xf32>
    %251 = arith.mulf %250, %226 : vector<2x32xf32>
    %252 = vector.extract_strided_slice %239 {offsets = [0, 128], sizes = [2, 32], strides = [1, 1]} : vector<2x256xf32> to vector<2x32xf32>
    %253 = vector.extract_strided_slice %240 {offsets = [0, 192], sizes = [2, 32], strides = [1, 1]} : vector<2x256xf32> to vector<2x32xf32>
    %254 = arith.mulf %252, %253 : vector<2x32xf32>
    %255 = arith.addf %251, %254 : vector<2x32xf32>
    %256 = vector.extract_strided_slice %239 {offsets = [0, 224], sizes = [2, 32], strides = [1, 1]} : vector<2x256xf32> to vector<2x32xf32>
    %257 = math.tanh %255 : vector<2x32xf32>
    %258 = arith.mulf %256, %257 : vector<2x32xf32>
    %259 = tpu.concatenate %249, %258 in 1 : vector<2x32xf32>, vector<2x32xf32> -> vector<2x64xf32>
    %260 = arith.truncf %259 : vector<2x64xf32> to vector<2x64xbf16>
    %cst_48 = arith.constant dense<0.000000e+00> : vector<2x256xf32>
    %261 = tpu.matmul %260, %27, %cst_48 {dimension_numbers = #tpu.dot_dimension_numbers<[1], [0], [0], [1], [0, 0, 1, 1], [], []>} : vector<2x64xbf16>, vector<64x256xbf16>, vector<2x256xf32> -> vector<2x256xf32>
    %262 = vector.extract_strided_slice %26 {offsets = [16, 0], sizes = [2, 256], strides = [1, 1]} : vector<18x256xf32> to vector<2x256xf32>
    %263 = arith.addf %261, %262 : vector<2x256xf32>
    %264 = arith.negf %263 : vector<2x256xf32>
    %265 = math.exp %264 : vector<2x256xf32>
    %cst_49 = arith.constant 1.000000e+00 : f32
    %266 = vector.broadcast %cst_49 : f32 to vector<2x256xf32>
    %267 = arith.addf %266, %265 : vector<2x256xf32>
    %268 = arith.divf %266, %267 : vector<2x256xf32>
    %269 = math.tanh %263 : vector<2x256xf32>
    %270 = vector.extract_strided_slice %268 {offsets = [0, 160], sizes = [2, 32], strides = [1, 1]} : vector<2x256xf32> to vector<2x32xf32>
    %271 = arith.mulf %270, %255 : vector<2x32xf32>
    %272 = vector.extract_strided_slice %268 {offsets = [0, 128], sizes = [2, 32], strides = [1, 1]} : vector<2x256xf32> to vector<2x32xf32>
    %273 = vector.extract_strided_slice %269 {offsets = [0, 192], sizes = [2, 32], strides = [1, 1]} : vector<2x256xf32> to vector<2x32xf32>
    %274 = arith.mulf %272, %273 : vector<2x32xf32>
    %275 = arith.addf %271, %274 : vector<2x32xf32>
    %276 = vector.extract_strided_slice %268 {offsets = [0, 224], sizes = [2, 32], strides = [1, 1]} : vector<2x256xf32> to vector<2x32xf32>
    %277 = math.tanh %275 : vector<2x32xf32>
    %278 = arith.mulf %276, %277 : vector<2x32xf32>
    %279 = arith.truncf %278 : vector<2x32xf32> to vector<2x32xbf16>
    %c0_50 = arith.constant 0 : index
    %c0_51 = arith.constant 0 : index
    %280 = vector.load %arg11[%c0_50, %c0_51] : memref<32x32xbf16, #tpu.memory_space<vmem>>, vector<32x32xbf16>
    %cst_52 = arith.constant dense<0.000000e+00> : vector<2x32xf32>
    %281 = tpu.matmul %279, %280, %cst_52 {dimension_numbers = #tpu.dot_dimension_numbers<[1], [0], [0], [1], [0, 0, 1, 1], [], []>} : vector<2x32xbf16>, vector<32x32xbf16>, vector<2x32xf32> -> vector<2x32xf32>
    %c0_53 = arith.constant 0 : index
    %c0_54 = arith.constant 0 : index
    %282 = vector.load %arg12[%c0_53, %c0_54] : memref<1x32xf32, #tpu.memory_space<vmem>>, vector<1x32xf32>
    %283 = vector.broadcast %282 : vector<1x32xf32> to vector<2x32xf32>
    %284 = arith.addf %281, %283 : vector<2x32xf32>
    %cst_55 = arith.constant 0.000000e+00 : f32
    %285 = vector.broadcast %cst_55 : f32 to vector<2x32xf32>
    %286 = arith.maximumf %284, %285 : vector<2x32xf32>
    %287 = arith.truncf %286 : vector<2x32xf32> to vector<2x32xbf16>
    %c0_56 = arith.constant 0 : index
    %c0_57 = arith.constant 0 : index
    %288 = vector.load %arg13[%c0_56, %c0_57] : memref<32x16xbf16, #tpu.memory_space<vmem>>, vector<32x16xbf16>
    %cst_58 = arith.constant dense<0.000000e+00> : vector<2x16xf32>
    %289 = tpu.matmul %287, %288, %cst_58 {dimension_numbers = #tpu.dot_dimension_numbers<[1], [0], [0], [1], [0, 0, 1, 1], [], []>} : vector<2x32xbf16>, vector<32x16xbf16>, vector<2x16xf32> -> vector<2x16xf32>
    %c0_59 = arith.constant 0 : index
    %c0_60 = arith.constant 0 : index
    %290 = vector.load %arg14[%c0_59, %c0_60] : memref<1x16xf32, #tpu.memory_space<vmem>>, vector<1x16xf32>
    %291 = vector.broadcast %290 : vector<1x16xf32> to vector<2x16xf32>
    %292 = arith.addf %289, %291 : vector<2x16xf32>
    %cst_61 = arith.constant 0.000000e+00 : f32
    %293 = vector.broadcast %cst_61 : f32 to vector<2x16xf32>
    %294 = arith.maximumf %292, %293 : vector<2x16xf32>
    %295 = arith.truncf %294 : vector<2x16xf32> to vector<2x16xbf16>
    %c0_62 = arith.constant 0 : index
    %c0_63 = arith.constant 0 : index
    %296 = vector.load %arg15[%c0_62, %c0_63] : memref<16x1xbf16, #tpu.memory_space<vmem>>, vector<16x1xbf16>
    %cst_64 = arith.constant dense<0.000000e+00> : vector<2x1xf32>
    %297 = tpu.matmul %295, %296, %cst_64 {dimension_numbers = #tpu.dot_dimension_numbers<[1], [0], [0], [1], [0, 0, 1, 1], [], []>} : vector<2x16xbf16>, vector<16x1xbf16>, vector<2x1xf32> -> vector<2x1xf32>
    %c0_65 = arith.constant 0 : index
    %c0_66 = arith.constant 0 : index
    %298 = vector.load %arg16[%c0_65, %c0_66] : memref<1x1xf32, #tpu.memory_space<vmem>>, vector<1x1xf32>
    %299 = vector.broadcast %298 : vector<1x1xf32> to vector<2x1xf32>
    %300 = arith.addf %297, %299 : vector<2x1xf32>
    %c0_67 = arith.constant 0 : index
    %c0_68 = arith.constant 0 : index
    %301 = vector.load %arg17[%c0_67, %c0_68] : memref<2x1xf32, #tpu.memory_space<vmem>>, vector<2x1xf32>
    tpu.vector_store %arg17[%c0_67, %c0_68], %300 {strides = array<i32>} : memref<2x1xf32, #tpu.memory_space<vmem>>, vector<2x1xf32>,
    return
  }
}

</mosaic_0001>

<llo_original>
// kernel: smp_lstm_forward.1
$region0: #{smp_lstm_forward.1}
  #allocation0 [shape = 'u32[]', space=smem, size = 0x4, offset = 0x4, fixed_abs, tag = 'smem constant byte address 0x4 - core index']
  #allocation1 [shape = 'u32[144,128]{1,0:T(1,128)}', space=vmem, size = 0x12000, scoped, tag = 'internal scratch']
  #allocation2 [shape = 'f32[1,1]{1,0:T(1,128)S(1)}', space=vmem, size = 0x200, scoped, tag = 'scoped memory for smp_lstm_forward.1']
  %s0 = inlined_call_operand.vmem [shape: f32[16,128], index: 0, kind: input, shape index: {}]
  %s1 = inlined_call_operand.vmem [shape: f32[2,2,32], index: 1, kind: input, shape index: {}]
  %s2 = inlined_call_operand.vmem [shape: f32[2,2,32], index: 2, kind: input, shape index: {}]
  %s3 = inlined_call_operand.vmem [shape: bf16[128,64], index: 3, kind: input, shape index: {}]
  %s4 = inlined_call_operand.vmem [shape: f32[1,64], index: 4, kind: input, shape index: {}]
  %s5 = inlined_call_operand.vmem [shape: bf16[64,32], index: 5, kind: input, shape index: {}]
  %s6 = inlined_call_operand.vmem [shape: f32[1,32], index: 6, kind: input, shape index: {}]
  %s7 = inlined_call_operand.vmem [shape: bf16[32,128], index: 7, kind: input, shape index: {}]
  %s8 = inlined_call_operand.vmem [shape: f32[1,128], index: 8, kind: input, shape index: {}]
  %s9 = inlined_call_operand.vmem [shape: bf16[64,256], index: 9, kind: input, shape index: {}]
  %s10 = inlined_call_operand.vmem [shape: f32[1,128], index: 10, kind: input, shape index: {}]
  %s11 = inlined_call_operand.vmem [shape: bf16[32,32], index: 11, kind: input, shape index: {}]
  %s12 = inlined_call_operand.vmem [shape: f32[1,32], index: 12, kind: input, shape index: {}]
  %s13 = inlined_call_operand.vmem [shape: bf16[32,16], index: 13, kind: input, shape index: {}]
  %s14 = inlined_call_operand.vmem [shape: f32[1,16], index: 14, kind: input, shape index: {}]
  %s15 = inlined_call_operand.vmem [shape: bf16[16,1], index: 15, kind: input, shape index: {}]
  %s16 = inlined_call_operand.<no memory space> [shape: f32[1,1], index: 16, kind: input, shape index: {}]
  %s17 = inlined_call_operand.vmem [shape: f32[2,1], index: 17, kind: output, shape index: {}]
  %s18 = sld [smem:[#allocation0]]
  $region78: #{smp_lstm_forward.1} parent=0
    _
  %s20 = ssub.s32 1, %s18
  %s21 = scalar_select 0, %s20, %s18
  %v22 = vstv %s16
  %23 = vst [vmem:[#allocation2] sm:$0x1] %v22
  // Predicated region
  $region2: #{smp_lstm_forward.1} parent=0 // pred_check
    _
  $region3: #{smp_lstm_forward.1} parent=0 // pred_check_branch
    %25 = sbr.rel (0) target = $region5
  $region4: #{smp_lstm_forward.1} parent=0 // pred_region
    _
  $region5: #{smp_lstm_forward.1} parent=0 // pred_fallthru
    _
  // Predicated region
  $region6: #{smp_lstm_forward.1} parent=0 // pred_check
    _
  $region7: #{smp_lstm_forward.1} parent=0 // pred_check_branch
    %27 = sbr.rel (0) target = $region9
  $region8: #{smp_lstm_forward.1} parent=0 // pred_region
    _
  $region9: #{smp_lstm_forward.1} parent=0 // pred_fallthru
    _
  // Predicated region
  $region10: #{smp_lstm_forward.1} parent=0 // pred_check
    _
  $region11: #{smp_lstm_forward.1} parent=0 // pred_check_branch
    %29 = sbr.rel (0) target = $region13
  $region12: #{smp_lstm_forward.1} parent=0 // pred_region
    _
  $region13: #{smp_lstm_forward.1} parent=0 // pred_fallthru
    _
  // Predicated region
  $region14: #{smp_lstm_forward.1} parent=0 // pred_check
    _
  $region15: #{smp_lstm_forward.1} parent=0 // pred_check_branch
    %31 = sbr.rel (0) target = $region17
  $region16: #{smp_lstm_forward.1} parent=0 // pred_region
    _
  $region17: #{smp_lstm_forward.1} parent=0 // pred_fallthru
    _
  // Predicated region
  $region18: #{smp_lstm_forward.1} parent=0 // pred_check
    _
  $region19: #{smp_lstm_forward.1} parent=0 // pred_check_branch
    %33 = sbr.rel (0) target = $region21
  $region20: #{smp_lstm_forward.1} parent=0 // pred_region
    _
  $region21: #{smp_lstm_forward.1} parent=0 // pred_fallthru
    _
  // Predicated region
  $region22: #{smp_lstm_forward.1} parent=0 // pred_check
    _
  $region23: #{smp_lstm_forward.1} parent=0 // pred_check_branch
    %35 = sbr.rel (0) target = $region25
  $region24: #{smp_lstm_forward.1} parent=0 // pred_region
    _
  $region25: #{smp_lstm_forward.1} parent=0 // pred_fallthru
    _
  // Predicated region
  $region26: #{smp_lstm_forward.1} parent=0 // pred_check
    _
  $region27: #{smp_lstm_forward.1} parent=0 // pred_check_branch
    %37 = sbr.rel (0) target = $region29
  $region28: #{smp_lstm_forward.1} parent=0 // pred_region
    _
  $region29: #{smp_lstm_forward.1} parent=0 // pred_fallthru
    _
  // Predicated region
  $region30: #{smp_lstm_forward.1} parent=0 // pred_check
    _
  $region31: #{smp_lstm_forward.1} parent=0 // pred_check_branch
    %39 = sbr.rel (0) target = $region33
  $region32: #{smp_lstm_forward.1} parent=0 // pred_region
    _
  $region33: #{smp_lstm_forward.1} parent=0 // pred_fallthru
    _
  // Predicated region
  $region34: #{smp_lstm_forward.1} parent=0 // pred_check
    _
  $region35: #{smp_lstm_forward.1} parent=0 // pred_check_branch
    %41 = sbr.rel (0) target = $region37
  $region36: #{smp_lstm_forward.1} parent=0 // pred_region
    _
  $region37: #{smp_lstm_forward.1} parent=0 // pred_fallthru
    _
  // Predicated region
  $region38: #{smp_lstm_forward.1} parent=0 // pred_check
    _
  $region39: #{smp_lstm_forward.1} parent=0 // pred_check_branch
    %43 = sbr.rel (0) target = $region41
  $region40: #{smp_lstm_forward.1} parent=0 // pred_region
    _
  $region41: #{smp_lstm_forward.1} parent=0 // pred_fallthru
    _
  // Predicated region
  $region42: #{smp_lstm_forward.1} parent=0 // pred_check
    _
  $region43: #{smp_lstm_forward.1} parent=0 // pred_check_branch
    %45 = sbr.rel (0) target = $region45
  $region44: #{smp_lstm_forward.1} parent=0 // pred_region
    _
  $region45: #{smp_lstm_forward.1} parent=0 // pred_fallthru
    _
  // Predicated region
  $region46: #{smp_lstm_forward.1} parent=0 // pred_check
    _
  $region47: #{smp_lstm_forward.1} parent=0 // pred_check_branch
    %47 = sbr.rel (0) target = $region49
  $region48: #{smp_lstm_forward.1} parent=0 // pred_region
    _
  $region49: #{smp_lstm_forward.1} parent=0 // pred_fallthru
    _
  // Predicated region
  $region50: #{smp_lstm_forward.1} parent=0 // pred_check
    _
  $region51: #{smp_lstm_forward.1} parent=0 // pred_check_branch
    %49 = sbr.rel (0) target = $region53
  $region52: #{smp_lstm_forward.1} parent=0 // pred_region
    _
  $region53: #{smp_lstm_forward.1} parent=0 // pred_fallthru
    _
  // Predicated region
  $region54: #{smp_lstm_forward.1} parent=0 // pred_check
    _
  $region55: #{smp_lstm_forward.1} parent=0 // pred_check_branch
    %51 = sbr.rel (0) target = $region57
  $region56: #{smp_lstm_forward.1} parent=0 // pred_region
    _
  $region57: #{smp_lstm_forward.1} parent=0 // pred_fallthru
    _
  // Predicated region
  $region58: #{smp_lstm_forward.1} parent=0 // pred_check
    _
  $region59: #{smp_lstm_forward.1} parent=0 // pred_check_branch
    %53 = sbr.rel (0) target = $region61
  $region60: #{smp_lstm_forward.1} parent=0 // pred_region
    _
  $region61: #{smp_lstm_forward.1} parent=0 // pred_fallthru
    _
  // Predicated region
  $region62: #{smp_lstm_forward.1} parent=0 // pred_check
    _
  $region63: #{smp_lstm_forward.1} parent=0 // pred_check_branch
    %55 = sbr.rel (0) target = $region65
  $region64: #{smp_lstm_forward.1} parent=0 // pred_region
    _
  $region65: #{smp_lstm_forward.1} parent=0 // pred_fallthru
    _
  // Predicated region
  $region66: #{smp_lstm_forward.1} parent=0 // pred_check
    _
  $region67: #{smp_lstm_forward.1} parent=0 // pred_check_branch
    %57 = sbr.rel (0) target = $region69
  $region68: #{smp_lstm_forward.1} parent=0 // pred_region
    _
  $region69: #{smp_lstm_forward.1} parent=0 // pred_fallthru
    _
  %v59 = vld [vmem:[%s0] sm:$0xff]
  %v60 = vld [vmem:[%s0 + $0x8] sm:$0xff]
  %v61 = vpack.c.bf16 %v60, %v59
  %v62 = vld [vmem:[%s3] sm:$0xf]
  %v63 = vld [vmem:[%s3 + $0x4] sm:$0xf]
  %v64 = vld [vmem:[%s3 + $0x8] sm:$0xf]
  %v65 = vld [vmem:[%s3 + $0xc] sm:$0xf]
  %v66 = vld [vmem:[%s3 + $0x10] sm:$0xf]
  %v67 = vld [vmem:[%s3 + $0x14] sm:$0xf]
  %v68 = vld [vmem:[%s3 + $0x18] sm:$0xf]
  %v69 = vld [vmem:[%s3 + $0x1c] sm:$0xf]
  %v70 = vld [vmem:[%s3 + $0x20] sm:$0xf]
  %v71 = vld [vmem:[%s3 + $0x24] sm:$0xf]
  %v72 = vld [vmem:[%s3 + $0x28] sm:$0xf]
  %v73 = vld [vmem:[%s3 + $0x2c] sm:$0xf]
  %v74 = vld [vmem:[%s3 + $0x30] sm:$0xf]
  %v75 = vld [vmem:[%s3 + $0x34] sm:$0xf]
  %v76 = vld [vmem:[%s3 + $0x38] sm:$0xf]
  %v77 = vld [vmem:[%s3 + $0x3c] sm:$0xf]
  %v78 = vld [vmem:[%s4] sm:$0x1]
  %v80 = vlaneseq
  %v81 = vshrl.u32 %v80, 7
  %v82 = vsub.s32 0, %v81
  %v83 = vrot.slane %v78, %v82
  %v101 = vunpack.c.l.b16 %v62
  %v102 = vunpack.c.l.b16 %v63
  %v103 = vunpack.c.l.b16 %v64
  %v104 = vunpack.c.l.b16 %v65
  %v105 = vunpack.c.l.b16 %v66
  %v106 = vunpack.c.l.b16 %v67
  %v107 = vunpack.c.l.b16 %v68
  %v108 = vunpack.c.l.b16 %v69
  %v109 = vunpack.c.l.b16 %v70
  %v110 = vunpack.c.l.b16 %v71
  %v111 = vunpack.c.l.b16 %v72
  %v112 = vunpack.c.l.b16 %v73
  %v113 = vunpack.c.l.b16 %v74
  %v114 = vunpack.c.l.b16 %v75
  %v115 = vunpack.c.l.b16 %v76
  %v116 = vunpack.c.l.b16 %v77
  %v117 = vpack.c.b16 %v102, %v101
  %v118 = vpack.c.b16 %v104, %v103
  %v119 = vpack.c.b16 %v106, %v105
  %v120 = vpack.c.b16 %v108, %v107
  %v121 = vpack.c.b16 %v110, %v109
  %v122 = vpack.c.b16 %v112, %v111
  %v123 = vpack.c.b16 %v114, %v113
  %v124 = vpack.c.b16 %v116, %v115
  %133 = vmatprep.subr.bf16.mxu0 0
  %134 = vmatpush1.bf16.msra.mxu0 %v124
  %135 = vmatprep.subr.bf16.mxu0 0
  %136 = vmatpush1.bf16.msra.mxu0 %v123
  %137 = vmatprep.subr.bf16.mxu0 0
  %138 = vmatpush1.bf16.msra.mxu0 %v122
  %139 = vmatprep.subr.bf16.mxu0 0
  %140 = vmatpush1.bf16.msra.mxu0 %v121
  %141 = vmatprep.subr.bf16.mxu0 0
  %142 = vmatpush1.bf16.msra.mxu0 %v120
  %143 = vmatprep.subr.bf16.mxu0 0
  %144 = vmatpush1.bf16.msra.mxu0 %v119
  %145 = vmatprep.subr.bf16.mxu0 0
  %146 = vmatpush1.bf16.msra.mxu0 %v118
  %147 = vmatprep.subr.bf16.mxu0 0
  %148 = vmatpush1.bf16.msra.mxu0 %v117
  %149 = vmatprep.subr.bf16.mxu0 0
  %150 = vmatpush2.bf16.msra.mxu0 0
  %151 = vmatprep.subr.bf16.mxu0 0
  %152 = vmatpush2.bf16.msra.mxu0 0
  %153 = vmatprep.subr.bf16.mxu0 0
  %154 = vmatpush2.bf16.msra.mxu0 0
  %155 = vmatprep.subr.bf16.mxu0 0
  %156 = vmatpush2.bf16.msra.mxu0 0
  %157 = vmatprep.subr.bf16.mxu0 0
  %158 = vmatpush2.bf16.msra.mxu0 0
  %159 = vmatprep.subr.bf16.mxu0 0
  %160 = vmatpush2.bf16.msra.mxu0 0
  %161 = vmatprep.subr.bf16.mxu0 0
  %162 = vmatpush2.bf16.msra.mxu0 0
  %163 = vmatprep.subr.bf16.mxu0 0
  %164 = vmatpush2.bf16.msra.mxu0 0
  %165 = vmatprep.mubr.bf16.mxu0 0
  %166 = vmatmul.mubr.bf16.gmra.mxu0 %v61
  %v167 = vpop.f32.mrf.mxu0
  %v168 = vadd.f32 %v83, %v167
  %v169 = vpop.f32.mrf.mxu0
  %v170 = vpop.f32.mrf.mxu0
  %v171 = vadd.f32 %v83, %v170
  %v172 = vpop.f32.mrf.mxu0
  %173 = vdwg.mxu0
  %v174 = vmax.f32 %v168, 0.0
  %v175 = vmax.f32 %v171, 0.0
  %v176 = vpack.c.bf16 %v175, %v174
  %v177 = vld [vmem:[%s5] sm:$0xf]
  %v178 = vld [vmem:[%s5 + $0x4] sm:$0xf]
  %v179 = vld [vmem:[%s5 + $0x8] sm:$0xf]
  %v180 = vld [vmem:[%s5 + $0xc] sm:$0xf]
  %v181 = vld [vmem:[%s5 + $0x10] sm:$0xf]
  %v182 = vld [vmem:[%s5 + $0x14] sm:$0xf]
  %v183 = vld [vmem:[%s5 + $0x18] sm:$0xf]
  %v184 = vld [vmem:[%s5 + $0x1c] sm:$0xf]
  %v185 = vld [vmem:[%s6] sm:$0x1]
  %v187 = vlaneseq
  %v188 = vshrl.u32 %v187, 7
  %v189 = vsub.s32 0, %v188
  %v190 = vrot.slane %v185, %v189
  %v200 = vunpack.c.l.b16 %v177
  %v201 = vunpack.c.l.b16 %v178
  %v202 = vunpack.c.l.b16 %v179
  %v203 = vunpack.c.l.b16 %v180
  %v204 = vunpack.c.l.b16 %v181
  %v205 = vunpack.c.l.b16 %v182
  %v206 = vunpack.c.l.b16 %v183
  %v207 = vunpack.c.l.b16 %v184
  %v208 = vpack.c.b16 %v201, %v200
  %v209 = vpack.c.b16 %v203, %v202
  %v210 = vpack.c.b16 %v205, %v204
  %v211 = vpack.c.b16 %v207, %v206
  %vm216 = vcmask 523264
  %v218 = vsel %vm216, %v176, 0
  %220 = vmatprep.subr.bf16.mxu0 0
  %221 = vmatpush1.bf16.msra.mxu0 0
  %222 = vmatprep.subr.bf16.mxu0 0
  %223 = vmatpush1.bf16.msra.mxu0 0
  %224 = vmatprep.subr.bf16.mxu0 0
  %225 = vmatpush1.bf16.msra.mxu0 0
  %226 = vmatprep.subr.bf16.mxu0 0
  %227 = vmatpush1.bf16.msra.mxu0 0
  %228 = vmatprep.subr.bf16.mxu0 0
  %229 = vmatpush1.bf16.msra.mxu0 %v211
  %230 = vmatprep.subr.bf16.mxu0 0
  %231 = vmatpush1.bf16.msra.mxu0 %v210
  %232 = vmatprep.subr.bf16.mxu0 0
  %233 = vmatpush1.bf16.msra.mxu0 %v209
  %234 = vmatprep.subr.bf16.mxu0 0
  %235 = vmatpush1.bf16.msra.mxu0 %v208
  %236 = vmatprep.subr.bf16.mxu0 0
  %237 = vmatpush2.bf16.msra.mxu0 0
  %238 = vmatprep.subr.bf16.mxu0 0
  %239 = vmatpush2.bf16.msra.mxu0 0
  %240 = vmatprep.subr.bf16.mxu0 0
  %241 = vmatpush2.bf16.msra.mxu0 0
  %242 = vmatprep.subr.bf16.mxu0 0
  %243 = vmatpush2.bf16.msra.mxu0 0
  %244 = vmatprep.subr.bf16.mxu0 0
  %245 = vmatpush2.bf16.msra.mxu0 0
  %246 = vmatprep.subr.bf16.mxu0 0
  %247 = vmatpush2.bf16.msra.mxu0 0
  %248 = vmatprep.subr.bf16.mxu0 0
  %249 = vmatpush2.bf16.msra.mxu0 0
  %250 = vmatprep.subr.bf16.mxu0 0
  %251 = vmatpush2.bf16.msra.mxu0 0
  %252 = vmatprep.mubr.bf16.mxu0 0
  %253 = vmatmul.mubr.bf16.gmra.mxu0 %v218
  %v254 = vpop.f32.mrf.mxu0
  %v255 = vadd.f32 %v190, %v254
  %v256 = vpop.f32.mrf.mxu0
  %v257 = vpop.f32.mrf.mxu0
  %v258 = vadd.f32 %v190, %v257
  %v259 = vpop.f32.mrf.mxu0
  %260 = vdwg.mxu0
  %v261 = vpack.c.bf16 %v258, %v255
  %v262 = vld [vmem:[%s7] sm:$0xf]
  %v263 = vld [vmem:[%s7 + $0x4] sm:$0xf]
  %v264 = vld [vmem:[%s7 + $0x8] sm:$0xf]
  %v265 = vld [vmem:[%s7 + $0xc] sm:$0xf]
  %v266 = vld [vmem:[%s8] sm:$0x1]
  %v268 = vlaneseq
  %v269 = vshrl.u32 %v268, 7
  %v270 = vsub.s32 0, %v269
  %v271 = vrot.slane %v266, %v270
  %v277 = vunpack.c.l.b16 %v262
  %v278 = vunpack.c.l.b16 %v263
  %v279 = vunpack.c.l.b16 %v264
  %v280 = vunpack.c.l.b16 %v265
  %v281 = vpack.c.b16 %v278, %v277
  %v282 = vpack.c.b16 %v280, %v279
  %vm285 = vcmask 261120
  %v287 = vsel %vm285, %v261, 0
  %289 = vmatprep.subr.bf16.mxu0 0
  %290 = vmatpush1.bf16.msra.mxu0 0
  %291 = vmatprep.subr.bf16.mxu0 0
  %292 = vmatpush1.bf16.msra.mxu0 0
  %293 = vmatprep.subr.bf16.mxu0 0
  %294 = vmatpush1.bf16.msra.mxu0 0
  %295 = vmatprep.subr.bf16.mxu0 0
  %296 = vmatpush1.bf16.msra.mxu0 0
  %297 = vmatprep.subr.bf16.mxu0 0
  %298 = vmatpush1.bf16.msra.mxu0 0
  %299 = vmatprep.subr.bf16.mxu0 0
  %300 = vmatpush1.bf16.msra.mxu0 0
  %301 = vmatprep.subr.bf16.mxu0 0
  %302 = vmatpush1.bf16.msra.mxu0 %v282
  %303 = vmatprep.subr.bf16.mxu0 0
  %304 = vmatpush1.bf16.msra.mxu0 %v281
  %305 = vmatprep.subr.bf16.mxu0 0
  %306 = vmatpush2.bf16.msra.mxu0 0
  %307 = vmatprep.subr.bf16.mxu0 0
  %308 = vmatpush2.bf16.msra.mxu0 0
  %309 = vmatprep.subr.bf16.mxu0 0
  %310 = vmatpush2.bf16.msra.mxu0 0
  %311 = vmatprep.subr.bf16.mxu0 0
  %312 = vmatpush2.bf16.msra.mxu0 0
  %313 = vmatprep.subr.bf16.mxu0 0
  %314 = vmatpush2.bf16.msra.mxu0 0
  %315 = vmatprep.subr.bf16.mxu0 0
  %316 = vmatpush2.bf16.msra.mxu0 0
  %317 = vmatprep.subr.bf16.mxu0 0
  %318 = vmatpush2.bf16.msra.mxu0 0
  %319 = vmatprep.subr.bf16.mxu0 0
  %320 = vmatpush2.bf16.msra.mxu0 0
  %321 = vmatprep.mubr.bf16.mxu0 0
  %322 = vmatmul.mubr.bf16.gmra.mxu0 %v287
  %v323 = vpop.f32.mrf.mxu0
  %v324 = vadd.f32 %v271, %v323
  %v325 = vpop.f32.mrf.mxu0
  %v326 = vpop.f32.mrf.mxu0
  %v327 = vadd.f32 %v271, %v326
  %v328 = vpop.f32.mrf.mxu0
  %329 = vdwg.mxu0
  %v330 = vld [vmem:[%s10] sm:$0x1]
  %v332 = vlaneseq
  %v333 = vshrl.u32 %v332, 7
  %v334 = vsub.s32 0, %v333
  %v335 = vrot.slane %v330, %v334
  %v337 = vld [vmem:[%s9] sm:$0xff]
  %v338 = vld [vmem:[%s9 + $0x8] sm:$0xff]
  %v339 = vld [vmem:[%s9 + $0x10] sm:$0xff]
  %v340 = vld [vmem:[%s9 + $0x18] sm:$0xff]
  %v341 = vld [vmem:[%s9 + $0x20] sm:$0xff]
  %v342 = vld [vmem:[%s9 + $0x28] sm:$0xff]
  %v343 = vld [vmem:[%s9 + $0x30] sm:$0xff]
  %v344 = vld [vmem:[%s9 + $0x38] sm:$0xff]
  %v345 = vld [vmem:[%s1] sm:$0x3]
  %v346 = vld [vmem:[%s2] sm:$0x3]
  %s347 = scalar_lea.vmem %s1, 2
  %v348 = vld [vmem:[%s347] sm:$0x3]
  %s349 = scalar_lea.vmem %s2, 2
  %v350 = vld [vmem:[%s349] sm:$0x3]
  %352 = vrot.lane.b32.xlu0 %v348, 32
  %v353 = vpop.permute.xlu0 %352
  %v355 = vsel %vm285, %v345, %v353
  %v356 = vpack.c.bf16 %v355, %v355
  %v365 = vunpack.c.l.b16 %v337
  %v366 = vunpack.c.h.b16 %v337
  %v367 = vunpack.c.l.b16 %v338
  %v368 = vunpack.c.h.b16 %v338
  %v369 = vunpack.c.l.b16 %v339
  %v370 = vunpack.c.h.b16 %v339
  %v371 = vunpack.c.l.b16 %v340
  %v372 = vunpack.c.h.b16 %v340
  %v373 = vunpack.c.l.b16 %v341
  %v374 = vunpack.c.h.b16 %v341
  %v375 = vunpack.c.l.b16 %v342
  %v376 = vunpack.c.h.b16 %v342
  %v377 = vunpack.c.l.b16 %v343
  %v378 = vunpack.c.h.b16 %v343
  %v379 = vunpack.c.l.b16 %v344
  %v380 = vunpack.c.h.b16 %v344
  %v381 = vpack.c.b16 %v367, %v365
  %v382 = vpack.c.b16 %v368, %v366
  %v383 = vpack.c.b16 %v371, %v369
  %v384 = vpack.c.b16 %v372, %v370
  %v385 = vpack.c.b16 %v375, %v373
  %v386 = vpack.c.b16 %v376, %v374
  %v387 = vpack.c.b16 %v379, %v377
  %v388 = vpack.c.b16 %v380, %v378
  %v398 = vsel %vm216, %v356, 0
  %400 = vmatprep.subr.bf16.mxu0 0
  %401 = vmatpush1.bf16.msra.mxu0 0
  %402 = vmatprep.subr.bf16.mxu0 0
  %403 = vmatpush1.bf16.msra.mxu0 0
  %404 = vmatprep.subr.bf16.mxu0 0
  %405 = vmatpush1.bf16.msra.mxu0 0
  %406 = vmatprep.subr.bf16.mxu0 0
  %407 = vmatpush1.bf16.msra.mxu0 0
  %408 = vmatprep.subr.bf16.mxu0 %v388
  %409 = vmatpush1.bf16.msra.mxu0 %v387
  %410 = vmatprep.subr.bf16.mxu0 %v386
  %411 = vmatpush1.bf16.msra.mxu0 %v385
  %412 = vmatprep.subr.bf16.mxu0 %v384
  %413 = vmatpush1.bf16.msra.mxu0 %v383
  %414 = vmatprep.subr.bf16.mxu0 %v382
  %415 = vmatpush1.bf16.msra.mxu0 %v381
  %416 = vmatprep.subr.bf16.mxu0 0
  %417 = vmatpush2.bf16.msra.mxu0 0
  %418 = vmatprep.subr.bf16.mxu0 0
  %419 = vmatpush2.bf16.msra.mxu0 0
  %420 = vmatprep.subr.bf16.mxu0 0
  %421 = vmatpush2.bf16.msra.mxu0 0
  %422 = vmatprep.subr.bf16.mxu0 0
  %423 = vmatpush2.bf16.msra.mxu0 0
  %424 = vmatprep.subr.bf16.mxu0 0
  %425 = vmatpush2.bf16.msra.mxu0 0
  %426 = vmatprep.subr.bf16.mxu0 0
  %427 = vmatpush2.bf16.msra.mxu0 0
  %428 = vmatprep.subr.bf16.mxu0 0
  %429 = vmatpush2.bf16.msra.mxu0 0
  %430 = vmatprep.subr.bf16.mxu0 0
  %431 = vmatpush2.bf16.msra.mxu0 0
  %432 = vmatprep.mubr.bf16.mxu0 0
  %433 = vmatmul.mubr.bf16.gmra.mxu0 %v398
  %v434 = vpop.f32.mrf.mxu0
  %v435 = vadd.f32 %v324, %v434
  %v436 = vpop.f32.mrf.mxu0
  %v437 = vpop.f32.mrf.mxu0
  %v438 = vpop.f32.mrf.mxu0
  %439 = vdwg.mxu0
  %v440 = vxor.u32 %v435, 2147483648
  %v441 = vmul.f32 %v440, 1.442695
  %v442 = vpow.pop %v441
  %v443 = vadd.f32 %v442, 1.0
  %v444 = vrcp.pop %v443
  %v445 = vmul.f32 1.0, %v444
  %v446 = vtanh.pop %v435
  %448 = vrot.lane.b32.xlu0 %v346, 32
  %v449 = vpop.permute.xlu0 %448
  %v451 = vmul.f32 %v445, %v449
  %453 = vrot.lane.b32.xlu0 %v446, 64
  %v454 = vpop.permute.xlu0 %453
  %v456 = vmul.f32 %v445, %v454
  %458 = vrot.lane.b32.xlu0 %v456, 32
  %v459 = vpop.permute.xlu0 %458
  %v461 = vadd.f32 %v451, %v459
  %v462 = vtanh.pop %v461
  %464 = vrot.lane.b32.xlu0 %v462, 64
  %v465 = vpop.permute.xlu0 %464
  %v467 = vmul.f32 %v445, %v465
  %469 = vrot.lane.b32.xlu0 %v467, 32
  %v470 = vpop.permute.xlu0 %469
  %v472 = vsel %vm285, %v470, %v353
  %v473 = vpack.c.bf16 %v472, %v472
  %v475 = vrot.slane %v324, 2
  %v476 = vrot.slane %v335, 2
  %v480 = vsel %vm216, %v473, 0
  %482 = vmatprep.subr.bf16.mxu0 0
  %483 = vmatpush1.bf16.msra.mxu0 0
  %484 = vmatprep.subr.bf16.mxu0 0
  %485 = vmatpush1.bf16.msra.mxu0 0
  %486 = vmatprep.subr.bf16.mxu0 0
  %487 = vmatpush1.bf16.msra.mxu0 0
  %488 = vmatprep.subr.bf16.mxu0 0
  %489 = vmatpush1.bf16.msra.mxu0 0
  %490 = vmatprep.subr.bf16.mxu0 %v388
  %491 = vmatpush1.bf16.msra.mxu0 %v387
  %492 = vmatprep.subr.bf16.mxu0 %v386
  %493 = vmatpush1.bf16.msra.mxu0 %v385
  %494 = vmatprep.subr.bf16.mxu0 %v384
  %495 = vmatpush1.bf16.msra.mxu0 %v383
  %496 = vmatprep.subr.bf16.mxu0 %v382
  %497 = vmatpush1.bf16.msra.mxu0 %v381
  %498 = vmatprep.subr.bf16.mxu0 0
  %499 = vmatpush2.bf16.msra.mxu0 0
  %500 = vmatprep.subr.bf16.mxu0 0
  %501 = vmatpush2.bf16.msra.mxu0 0
  %502 = vmatprep.subr.bf16.mxu0 0
  %503 = vmatpush2.bf16.msra.mxu0 0
  %504 = vmatprep.subr.bf16.mxu0 0
  %505 = vmatpush2.bf16.msra.mxu0 0
  %506 = vmatprep.subr.bf16.mxu0 0
  %507 = vmatpush2.bf16.msra.mxu0 0
  %508 = vmatprep.subr.bf16.mxu0 0
  %509 = vmatpush2.bf16.msra.mxu0 0
  %510 = vmatprep.subr.bf16.mxu0 0
  %511 = vmatpush2.bf16.msra.mxu0 0
  %512 = vmatprep.subr.bf16.mxu0 0
  %513 = vmatpush2.bf16.msra.mxu0 0
  %514 = vmatprep.mubr.bf16.mxu0 0
  %515 = vmatmul.mubr.bf16.gmra.mxu0 %v480
  %v516 = vpop.f32.mrf.mxu0
  %v517 = vadd.f32 %v475, %v516
  %v518 = vpop.f32.mrf.mxu0
  %v519 = vadd.f32 %v476, %v518
  %v520 = vpop.f32.mrf.mxu0
  %v521 = vpop.f32.mrf.mxu0
  %522 = vdwg.mxu0
  %v523 = vxor.u32 %v517, 2147483648
  %v524 = vxor.u32 %v519, 2147483648
  %v525 = vmul.f32 %v523, 1.442695
  %v526 = vpow.pop %v525
  %v527 = vmul.f32 %v524, 1.442695
  %v528 = vpow.pop %v527
  %v529 = vadd.f32 %v526, 1.0
  %v530 = vadd.f32 %v528, 1.0
  %v531 = vrcp.pop %v529
  %v532 = vmul.f32 1.0, %v531
  %v533 = vrcp.pop %v530
  %v534 = vmul.f32 1.0, %v533
  %v535 = vtanh.pop %v517
  %v536 = vtanh.pop %v519
  %v537 = vmul.f32 %v532, %v461
  %539 = vrot.lane.b32.xlu0 %v535, 64
  %v540 = vpop.permute.xlu0 %539
  %v542 = vmul.f32 %v532, %v540
  %544 = vrot.lane.b32.xlu0 %v542, 32
  %v545 = vpop.permute.xlu0 %544
  %v547 = vadd.f32 %v537, %v545
  %v548 = vtanh.pop %v547
  %550 = vrot.lane.b32.xlu0 %v548, 64
  %v551 = vpop.permute.xlu0 %550
  %v553 = vmul.f32 %v532, %v551
  %555 = vrot.lane.b32.xlu0 %v350, 32
  %v556 = vpop.permute.xlu0 %555
  %v558 = vmul.f32 %v534, %v556
  %560 = vrot.lane.b32.xlu0 %v536, 64
  %v561 = vpop.permute.xlu0 %560
  %v563 = vmul.f32 %v534, %v561
  %565 = vrot.lane.b32.xlu0 %v563, 32
  %v566 = vpop.permute.xlu0 %565
  %v568 = vadd.f32 %v558, %v566
  %v569 = vtanh.pop %v568
  %571 = vrot.lane.b32.xlu0 %v569, 64
  %v572 = vpop.permute.xlu0 %571
  %v574 = vmul.f32 %v534, %v572
  %576 = vrot.lane.b32.xlu0 %v553, 32
  %v577 = vpop.permute.xlu0 %576
  %580 = vrot.lane.b32.xlu0 %v574, 64
  %v581 = vpop.permute.xlu0 %580
  %v583 = vsel %vm285, %v577, %v581
  %v584 = vpack.c.bf16 %v583, %v583
  %v585 = vrot.slane %v324, 4
  %v586 = vrot.slane %v335, 4
  %v590 = vsel %vm216, %v584, 0
  %592 = vmatprep.subr.bf16.mxu0 0
  %593 = vmatpush1.bf16.msra.mxu0 0
  %594 = vmatprep.subr.bf16.mxu0 0
  %595 = vmatpush1.bf16.msra.mxu0 0
  %596 = vmatprep.subr.bf16.mxu0 0
  %597 = vmatpush1.bf16.msra.mxu0 0
  %598 = vmatprep.subr.bf16.mxu0 0
  %599 = vmatpush1.bf16.msra.mxu0 0
  %600 = vmatprep.subr.bf16.mxu0 %v388
  %601 = vmatpush1.bf16.msra.mxu0 %v387
  %602 = vmatprep.subr.bf16.mxu0 %v386
  %603 = vmatpush1.bf16.msra.mxu0 %v385
  %604 = vmatprep.subr.bf16.mxu0 %v384
  %605 = vmatpush1.bf16.msra.mxu0 %v383
  %606 = vmatprep.subr.bf16.mxu0 %v382
  %607 = vmatpush1.bf16.msra.mxu0 %v381
  %608 = vmatprep.subr.bf16.mxu0 0
  %609 = vmatpush2.bf16.msra.mxu0 0
  %610 = vmatprep.subr.bf16.mxu0 0
  %611 = vmatpush2.bf16.msra.mxu0 0
  %612 = vmatprep.subr.bf16.mxu0 0
  %613 = vmatpush2.bf16.msra.mxu0 0
  %614 = vmatprep.subr.bf16.mxu0 0
  %615 = vmatpush2.bf16.msra.mxu0 0
  %616 = vmatprep.subr.bf16.mxu0 0
  %617 = vmatpush2.bf16.msra.mxu0 0
  %618 = vmatprep.subr.bf16.mxu0 0
  %619 = vmatpush2.bf16.msra.mxu0 0
  %620 = vmatprep.subr.bf16.mxu0 0
  %621 = vmatpush2.bf16.msra.mxu0 0
  %622 = vmatprep.subr.bf16.mxu0 0
  %623 = vmatpush2.bf16.msra.mxu0 0
  %624 = vmatprep.mubr.bf16.mxu0 0
  %625 = vmatmul.mubr.bf16.gmra.mxu0 %v590
  %v626 = vpop.f32.mrf.mxu0
  %v627 = vadd.f32 %v585, %v626
  %v628 = vpop.f32.mrf.mxu0
  %v629 = vadd.f32 %v586, %v628
  %v630 = vpop.f32.mrf.mxu0
  %v631 = vpop.f32.mrf.mxu0
  %632 = vdwg.mxu0
  %v633 = vxor.u32 %v627, 2147483648
  %v634 = vxor.u32 %v629, 2147483648
  %v635 = vmul.f32 %v633, 1.442695
  %v636 = vpow.pop %v635
  %v637 = vmul.f32 %v634, 1.442695
  %v638 = vpow.pop %v637
  %v639 = vadd.f32 %v636, 1.0
  %v640 = vadd.f32 %v638, 1.0
  %v641 = vrcp.pop %v639
  %v642 = vmul.f32 1.0, %v641
  %v643 = vrcp.pop %v640
  %v644 = vmul.f32 1.0, %v643
  %v645 = vtanh.pop %v627
  %v646 = vtanh.pop %v629
  %v647 = vmul.f32 %v642, %v547
  %649 = vrot.lane.b32.xlu0 %v645, 64
  %v650 = vpop.permute.xlu0 %649
  %v652 = vmul.f32 %v642, %v650
  %654 = vrot.lane.b32.xlu0 %v652, 32
  %v655 = vpop.permute.xlu0 %654
  %v657 = vadd.f32 %v647, %v655
  %v658 = vtanh.pop %v657
  %660 = vrot.lane.b32.xlu0 %v658, 64
  %v661 = vpop.permute.xlu0 %660
  %v663 = vmul.f32 %v642, %v661
  %v664 = vmul.f32 %v644, %v568
  %666 = vrot.lane.b32.xlu0 %v646, 64
  %v667 = vpop.permute.xlu0 %666
  %v669 = vmul.f32 %v644, %v667
  %671 = vrot.lane.b32.xlu0 %v669, 32
  %v672 = vpop.permute.xlu0 %671
  %v674 = vadd.f32 %v664, %v672
  %v675 = vtanh.pop %v674
  %677 = vrot.lane.b32.xlu0 %v675, 64
  %v678 = vpop.permute.xlu0 %677
  %v680 = vmul.f32 %v644, %v678
  %682 = vrot.lane.b32.xlu0 %v663, 32
  %v683 = vpop.permute.xlu0 %682
  %686 = vrot.lane.b32.xlu0 %v680, 64
  %v687 = vpop.permute.xlu0 %686
  %v689 = vsel %vm285, %v683, %v687
  %v690 = vpack.c.bf16 %v689, %v689
  %v691 = vrot.slane %v324, 6
  %v692 = vrot.slane %v335, 6
  %v696 = vsel %vm216, %v690, 0
  %698 = vmatprep.subr.bf16.mxu0 0
  %699 = vmatpush1.bf16.msra.mxu0 0
  %700 = vmatprep.subr.bf16.mxu0 0
  %701 = vmatpush1.bf16.msra.mxu0 0
  %702 = vmatprep.subr.bf16.mxu0 0
  %703 = vmatpush1.bf16.msra.mxu0 0
  %704 = vmatprep.subr.bf16.mxu0 0
  %705 = vmatpush1.bf16.msra.mxu0 0
  %706 = vmatprep.subr.bf16.mxu0 %v388
  %707 = vmatpush1.bf16.msra.mxu0 %v387
  %708 = vmatprep.subr.bf16.mxu0 %v386
  %709 = vmatpush1.bf16.msra.mxu0 %v385
  %710 = vmatprep.subr.bf16.mxu0 %v384
  %711 = vmatpush1.bf16.msra.mxu0 %v383
  %712 = vmatprep.subr.bf16.mxu0 %v382
  %713 = vmatpush1.bf16.msra.mxu0 %v381
  %714 = vmatprep.subr.bf16.mxu0 0
  %715 = vmatpush2.bf16.msra.mxu0 0
  %716 = vmatprep.subr.bf16.mxu0 0
  %717 = vmatpush2.bf16.msra.mxu0 0
  %718 = vmatprep.subr.bf16.mxu0 0
  %719 = vmatpush2.bf16.msra.mxu0 0
  %720 = vmatprep.subr.bf16.mxu0 0
  %721 = vmatpush2.bf16.msra.mxu0 0
  %722 = vmatprep.subr.bf16.mxu0 0
  %723 = vmatpush2.bf16.msra.mxu0 0
  %724 = vmatprep.subr.bf16.mxu0 0
  %725 = vmatpush2.bf16.msra.mxu0 0
  %726 = vmatprep.subr.bf16.mxu0 0
  %727 = vmatpush2.bf16.msra.mxu0 0
  %728 = vmatprep.subr.bf16.mxu0 0
  %729 = vmatpush2.bf16.msra.mxu0 0
  %730 = vmatprep.mubr.bf16.mxu0 0
  %731 = vmatmul.mubr.bf16.gmra.mxu0 %v696
  %v732 = vpop.f32.mrf.mxu0
  %v733 = vadd.f32 %v691, %v732
  %v734 = vpop.f32.mrf.mxu0
  %v735 = vadd.f32 %v692, %v734
  %v736 = vpop.f32.mrf.mxu0
  %v737 = vpop.f32.mrf.mxu0
  %738 = vdwg.mxu0
  %v739 = vxor.u32 %v733, 2147483648
  %v740 = vxor.u32 %v735, 2147483648
  %v741 = vmul.f32 %v739, 1.442695
  %v742 = vpow.pop %v741
  %v743 = vmul.f32 %v740, 1.442695
  %v744 = vpow.pop %v743
  %v745 = vadd.f32 %v742, 1.0
  %v746 = vadd.f32 %v744, 1.0
  %v747 = vrcp.pop %v745
  %v748 = vmul.f32 1.0, %v747
  %v749 = vrcp.pop %v746
  %v750 = vmul.f32 1.0, %v749
  %v751 = vtanh.pop %v733
  %v752 = vtanh.pop %v735
  %v753 = vmul.f32 %v748, %v657
  %755 = vrot.lane.b32.xlu0 %v751, 64
  %v756 = vpop.permute.xlu0 %755
  %v758 = vmul.f32 %v748, %v756
  %760 = vrot.lane.b32.xlu0 %v758, 32
  %v761 = vpop.permute.xlu0 %760
  %v763 = vadd.f32 %v753, %v761
  %v764 = vtanh.pop %v763
  %766 = vrot.lane.b32.xlu0 %v764, 64
  %v767 = vpop.permute.xlu0 %766
  %v769 = vmul.f32 %v748, %v767
  %v770 = vmul.f32 %v750, %v674
  %772 = vrot.lane.b32.xlu0 %v752, 64
  %v773 = vpop.permute.xlu0 %772
  %v775 = vmul.f32 %v750, %v773
  %777 = vrot.lane.b32.xlu0 %v775, 32
  %v778 = vpop.permute.xlu0 %777
  %v780 = vadd.f32 %v770, %v778
  %v781 = vtanh.pop %v780
  %783 = vrot.lane.b32.xlu0 %v781, 64
  %v784 = vpop.permute.xlu0 %783
  %v786 = vmul.f32 %v750, %v784
  %788 = vrot.lane.b32.xlu0 %v769, 32
  %v789 = vpop.permute.xlu0 %788
  %792 = vrot.lane.b32.xlu0 %v786, 64
  %v793 = vpop.permute.xlu0 %792
  %v795 = vsel %vm285, %v789, %v793
  %v796 = vpack.c.bf16 %v795, %v795
  %v798 = vsel %vm216, %v796, 0
  %800 = vmatprep.subr.bf16.mxu0 0
  %801 = vmatpush1.bf16.msra.mxu0 0
  %802 = vmatprep.subr.bf16.mxu0 0
  %803 = vmatpush1.bf16.msra.mxu0 0
  %804 = vmatprep.subr.bf16.mxu0 0
  %805 = vmatpush1.bf16.msra.mxu0 0
  %806 = vmatprep.subr.bf16.mxu0 0
  %807 = vmatpush1.bf16.msra.mxu0 0
  %808 = vmatprep.subr.bf16.mxu0 %v388
  %809 = vmatpush1.bf16.msra.mxu0 %v387
  %810 = vmatprep.subr.bf16.mxu0 %v386
  %811 = vmatpush1.bf16.msra.mxu0 %v385
  %812 = vmatprep.subr.bf16.mxu0 %v384
  %813 = vmatpush1.bf16.msra.mxu0 %v383
  %814 = vmatprep.subr.bf16.mxu0 %v382
  %815 = vmatpush1.bf16.msra.mxu0 %v381
  %816 = vmatprep.subr.bf16.mxu0 0
  %817 = vmatpush2.bf16.msra.mxu0 0
  %818 = vmatprep.subr.bf16.mxu0 0
  %819 = vmatpush2.bf16.msra.mxu0 0
  %820 = vmatprep.subr.bf16.mxu0 0
  %821 = vmatpush2.bf16.msra.mxu0 0
  %822 = vmatprep.subr.bf16.mxu0 0
  %823 = vmatpush2.bf16.msra.mxu0 0
  %824 = vmatprep.subr.bf16.mxu0 0
  %825 = vmatpush2.bf16.msra.mxu0 0
  %826 = vmatprep.subr.bf16.mxu0 0
  %827 = vmatpush2.bf16.msra.mxu0 0
  %828 = vmatprep.subr.bf16.mxu0 0
  %829 = vmatpush2.bf16.msra.mxu0 0
  %830 = vmatprep.subr.bf16.mxu0 0
  %831 = vmatpush2.bf16.msra.mxu0 0
  %832 = vmatprep.mubr.bf16.mxu0 0
  %833 = vmatmul.mubr.bf16.gmra.mxu0 %v798
  %v834 = vpop.f32.mrf.mxu0
  %v835 = vadd.f32 %v327, %v834
  %v836 = vpop.f32.mrf.mxu0
  %v837 = vadd.f32 %v335, %v836
  %v838 = vpop.f32.mrf.mxu0
  %v839 = vpop.f32.mrf.mxu0
  %840 = vdwg.mxu0
  %v841 = vxor.u32 %v835, 2147483648
  %v842 = vxor.u32 %v837, 2147483648
  %v843 = vmul.f32 %v841, 1.442695
  %v844 = vpow.pop %v843
  %v845 = vmul.f32 %v842, 1.442695
  %v846 = vpow.pop %v845
  %v847 = vadd.f32 %v844, 1.0
  %v848 = vadd.f32 %v846, 1.0
  %v849 = vrcp.pop %v847
  %v850 = vmul.f32 1.0, %v849
  %v851 = vrcp.pop %v848
  %v852 = vmul.f32 1.0, %v851
  %v853 = vtanh.pop %v835
  %v854 = vtanh.pop %v837
  %v855 = vmul.f32 %v850, %v763
  %857 = vrot.lane.b32.xlu0 %v853, 64
  %v858 = vpop.permute.xlu0 %857
  %v860 = vmul.f32 %v850, %v858
  %862 = vrot.lane.b32.xlu0 %v860, 32
  %v863 = vpop.permute.xlu0 %862
  %v865 = vadd.f32 %v855, %v863
  %v866 = vtanh.pop %v865
  %868 = vrot.lane.b32.xlu0 %v866, 64
  %v869 = vpop.permute.xlu0 %868
  %v871 = vmul.f32 %v850, %v869
  %v872 = vmul.f32 %v852, %v780
  %874 = vrot.lane.b32.xlu0 %v854, 64
  %v875 = vpop.permute.xlu0 %874
  %v877 = vmul.f32 %v852, %v875
  %879 = vrot.lane.b32.xlu0 %v877, 32
  %v880 = vpop.permute.xlu0 %879
  %v882 = vadd.f32 %v872, %v880
  %v883 = vtanh.pop %v882
  %885 = vrot.lane.b32.xlu0 %v883, 64
  %v886 = vpop.permute.xlu0 %885
  %v888 = vmul.f32 %v852, %v886
  %890 = vrot.lane.b32.xlu0 %v871, 32
  %v891 = vpop.permute.xlu0 %890
  %894 = vrot.lane.b32.xlu0 %v888, 64
  %v895 = vpop.permute.xlu0 %894
  %v897 = vsel %vm285, %v891, %v895
  %v898 = vpack.c.bf16 %v897, %v897
  %v900 = vrot.slane %v327, 2
  %v903 = vsel %vm216, %v898, 0
  %905 = vmatprep.subr.bf16.mxu0 0
  %906 = vmatpush1.bf16.msra.mxu0 0
  %907 = vmatprep.subr.bf16.mxu0 0
  %908 = vmatpush1.bf16.msra.mxu0 0
  %909 = vmatprep.subr.bf16.mxu0 0
  %910 = vmatpush1.bf16.msra.mxu0 0
  %911 = vmatprep.subr.bf16.mxu0 0
  %912 = vmatpush1.bf16.msra.mxu0 0
  %913 = vmatprep.subr.bf16.mxu0 %v388
  %914 = vmatpush1.bf16.msra.mxu0 %v387
  %915 = vmatprep.subr.bf16.mxu0 %v386
  %916 = vmatpush1.bf16.msra.mxu0 %v385
  %917 = vmatprep.subr.bf16.mxu0 %v384
  %918 = vmatpush1.bf16.msra.mxu0 %v383
  %919 = vmatprep.subr.bf16.mxu0 %v382
  %920 = vmatpush1.bf16.msra.mxu0 %v381
  %921 = vmatprep.subr.bf16.mxu0 0
  %922 = vmatpush2.bf16.msra.mxu0 0
  %923 = vmatprep.subr.bf16.mxu0 0
  %924 = vmatpush2.bf16.msra.mxu0 0
  %925 = vmatprep.subr.bf16.mxu0 0
  %926 = vmatpush2.bf16.msra.mxu0 0
  %927 = vmatprep.subr.bf16.mxu0 0
  %928 = vmatpush2.bf16.msra.mxu0 0
  %929 = vmatprep.subr.bf16.mxu0 0
  %930 = vmatpush2.bf16.msra.mxu0 0
  %931 = vmatprep.subr.bf16.mxu0 0
  %932 = vmatpush2.bf16.msra.mxu0 0
  %933 = vmatprep.subr.bf16.mxu0 0
  %934 = vmatpush2.bf16.msra.mxu0 0
  %935 = vmatprep.subr.bf16.mxu0 0
  %936 = vmatpush2.bf16.msra.mxu0 0
  %937 = vmatprep.mubr.bf16.mxu0 0
  %938 = vmatmul.mubr.bf16.gmra.mxu0 %v903
  %v939 = vpop.f32.mrf.mxu0
  %v940 = vadd.f32 %v900, %v939
  %v941 = vpop.f32.mrf.mxu0
  %v942 = vadd.f32 %v476, %v941
  %v943 = vpop.f32.mrf.mxu0
  %v944 = vpop.f32.mrf.mxu0
  %945 = vdwg.mxu0
  %v946 = vxor.u32 %v940, 2147483648
  %v947 = vxor.u32 %v942, 2147483648
  %v948 = vmul.f32 %v946, 1.442695
  %v949 = vpow.pop %v948
  %v950 = vmul.f32 %v947, 1.442695
  %v951 = vpow.pop %v950
  %v952 = vadd.f32 %v949, 1.0
  %v953 = vadd.f32 %v951, 1.0
  %v954 = vrcp.pop %v952
  %v955 = vmul.f32 1.0, %v954
  %v956 = vrcp.pop %v953
  %v957 = vmul.f32 1.0, %v956
  %v958 = vtanh.pop %v940
  %v959 = vtanh.pop %v942
  %v960 = vmul.f32 %v955, %v865
  %962 = vrot.lane.b32.xlu0 %v958, 64
  %v963 = vpop.permute.xlu0 %962
  %v965 = vmul.f32 %v955, %v963
  %967 = vrot.lane.b32.xlu0 %v965, 32
  %v968 = vpop.permute.xlu0 %967
  %v970 = vadd.f32 %v960, %v968
  %v971 = vtanh.pop %v970
  %973 = vrot.lane.b32.xlu0 %v971, 64
  %v974 = vpop.permute.xlu0 %973
  %v976 = vmul.f32 %v955, %v974
  %v977 = vmul.f32 %v957, %v882
  %979 = vrot.lane.b32.xlu0 %v959, 64
  %v980 = vpop.permute.xlu0 %979
  %v982 = vmul.f32 %v957, %v980
  %984 = vrot.lane.b32.xlu0 %v982, 32
  %v985 = vpop.permute.xlu0 %984
  %v987 = vadd.f32 %v977, %v985
  %v988 = vtanh.pop %v987
  %990 = vrot.lane.b32.xlu0 %v988, 64
  %v991 = vpop.permute.xlu0 %990
  %v993 = vmul.f32 %v957, %v991
  %995 = vrot.lane.b32.xlu0 %v976, 32
  %v996 = vpop.permute.xlu0 %995
  %999 = vrot.lane.b32.xlu0 %v993, 64
  %v1000 = vpop.permute.xlu0 %999
  %v1002 = vsel %vm285, %v996, %v1000
  %v1003 = vpack.c.bf16 %v1002, %v1002
  %v1004 = vrot.slane %v327, 4
  %v1007 = vsel %vm216, %v1003, 0
  %1009 = vmatprep.subr.bf16.mxu0 0
  %1010 = vmatpush1.bf16.msra.mxu0 0
  %1011 = vmatprep.subr.bf16.mxu0 0
  %1012 = vmatpush1.bf16.msra.mxu0 0
  %1013 = vmatprep.subr.bf16.mxu0 0
  %1014 = vmatpush1.bf16.msra.mxu0 0
  %1015 = vmatprep.subr.bf16.mxu0 0
  %1016 = vmatpush1.bf16.msra.mxu0 0
  %1017 = vmatprep.subr.bf16.mxu0 %v388
  %1018 = vmatpush1.bf16.msra.mxu0 %v387
  %1019 = vmatprep.subr.bf16.mxu0 %v386
  %1020 = vmatpush1.bf16.msra.mxu0 %v385
  %1021 = vmatprep.subr.bf16.mxu0 %v384
  %1022 = vmatpush1.bf16.msra.mxu0 %v383
  %1023 = vmatprep.subr.bf16.mxu0 %v382
  %1024 = vmatpush1.bf16.msra.mxu0 %v381
  %1025 = vmatprep.subr.bf16.mxu0 0
  %1026 = vmatpush2.bf16.msra.mxu0 0
  %1027 = vmatprep.subr.bf16.mxu0 0
  %1028 = vmatpush2.bf16.msra.mxu0 0
  %1029 = vmatprep.subr.bf16.mxu0 0
  %1030 = vmatpush2.bf16.msra.mxu0 0
  %1031 = vmatprep.subr.bf16.mxu0 0
  %1032 = vmatpush2.bf16.msra.mxu0 0
  %1033 = vmatprep.subr.bf16.mxu0 0
  %1034 = vmatpush2.bf16.msra.mxu0 0
  %1035 = vmatprep.subr.bf16.mxu0 0
  %1036 = vmatpush2.bf16.msra.mxu0 0
  %1037 = vmatprep.subr.bf16.mxu0 0
  %1038 = vmatpush2.bf16.msra.mxu0 0
  %1039 = vmatprep.subr.bf16.mxu0 0
  %1040 = vmatpush2.bf16.msra.mxu0 0
  %1041 = vmatprep.mubr.bf16.mxu0 0
  %1042 = vmatmul.mubr.bf16.gmra.mxu0 %v1007
  %v1043 = vpop.f32.mrf.mxu0
  %v1044 = vadd.f32 %v1004, %v1043
  %v1045 = vpop.f32.mrf.mxu0
  %v1046 = vadd.f32 %v586, %v1045
  %v1047 = vpop.f32.mrf.mxu0
  %v1048 = vpop.f32.mrf.mxu0
  %1049 = vdwg.mxu0
  %v1050 = vxor.u32 %v1044, 2147483648
  %v1051 = vxor.u32 %v1046, 2147483648
  %v1052 = vmul.f32 %v1050, 1.442695
  %v1053 = vpow.pop %v1052
  %v1054 = vmul.f32 %v1051, 1.442695
  %v1055 = vpow.pop %v1054
  %v1056 = vadd.f32 %v1053, 1.0
  %v1057 = vadd.f32 %v1055, 1.0
  %v1058 = vrcp.pop %v1056
  %v1059 = vmul.f32 1.0, %v1058
  %v1060 = vrcp.pop %v1057
  %v1061 = vmul.f32 1.0, %v1060
  %v1062 = vtanh.pop %v1044
  %v1063 = vtanh.pop %v1046
  %v1064 = vmul.f32 %v1059, %v970
  %1066 = vrot.lane.b32.xlu0 %v1062, 64
  %v1067 = vpop.permute.xlu0 %1066
  %v1069 = vmul.f32 %v1059, %v1067
  %1071 = vrot.lane.b32.xlu0 %v1069, 32
  %v1072 = vpop.permute.xlu0 %1071
  %v1074 = vadd.f32 %v1064, %v1072
  %v1075 = vtanh.pop %v1074
  %1077 = vrot.lane.b32.xlu0 %v1075, 64
  %v1078 = vpop.permute.xlu0 %1077
  %v1080 = vmul.f32 %v1059, %v1078
  %v1081 = vmul.f32 %v1061, %v987
  %1083 = vrot.lane.b32.xlu0 %v1063, 64
  %v1084 = vpop.permute.xlu0 %1083
  %v1086 = vmul.f32 %v1061, %v1084
  %1088 = vrot.lane.b32.xlu0 %v1086, 32
  %v1089 = vpop.permute.xlu0 %1088
  %v1091 = vadd.f32 %v1081, %v1089
  %v1092 = vtanh.pop %v1091
  %1094 = vrot.lane.b32.xlu0 %v1092, 64
  %v1095 = vpop.permute.xlu0 %1094
  %v1097 = vmul.f32 %v1061, %v1095
  %1099 = vrot.lane.b32.xlu0 %v1080, 32
  %v1100 = vpop.permute.xlu0 %1099
  %1103 = vrot.lane.b32.xlu0 %v1097, 64
  %v1104 = vpop.permute.xlu0 %1103
  %v1106 = vsel %vm285, %v1100, %v1104
  %v1107 = vpack.c.bf16 %v1106, %v1106
  %v1108 = vrot.slane %v327, 6
  %v1111 = vsel %vm216, %v1107, 0
  %1113 = vmatprep.subr.bf16.mxu0 0
  %1114 = vmatpush1.bf16.msra.mxu0 0
  %1115 = vmatprep.subr.bf16.mxu0 0
  %1116 = vmatpush1.bf16.msra.mxu0 0
  %1117 = vmatprep.subr.bf16.mxu0 0
  %1118 = vmatpush1.bf16.msra.mxu0 0
  %1119 = vmatprep.subr.bf16.mxu0 0
  %1120 = vmatpush1.bf16.msra.mxu0 0
  %1121 = vmatprep.subr.bf16.mxu0 %v388
  %1122 = vmatpush1.bf16.msra.mxu0 %v387
  %1123 = vmatprep.subr.bf16.mxu0 %v386
  %1124 = vmatpush1.bf16.msra.mxu0 %v385
  %1125 = vmatprep.subr.bf16.mxu0 %v384
  %1126 = vmatpush1.bf16.msra.mxu0 %v383
  %1127 = vmatprep.subr.bf16.mxu0 %v382
  %1128 = vmatpush1.bf16.msra.mxu0 %v381
  %1129 = vmatprep.subr.bf16.mxu0 0
  %1130 = vmatpush2.bf16.msra.mxu0 0
  %1131 = vmatprep.subr.bf16.mxu0 0
  %1132 = vmatpush2.bf16.msra.mxu0 0
  %1133 = vmatprep.subr.bf16.mxu0 0
  %1134 = vmatpush2.bf16.msra.mxu0 0
  %1135 = vmatprep.subr.bf16.mxu0 0
  %1136 = vmatpush2.bf16.msra.mxu0 0
  %1137 = vmatprep.subr.bf16.mxu0 0
  %1138 = vmatpush2.bf16.msra.mxu0 0
  %1139 = vmatprep.subr.bf16.mxu0 0
  %1140 = vmatpush2.bf16.msra.mxu0 0
  %1141 = vmatprep.subr.bf16.mxu0 0
  %1142 = vmatpush2.bf16.msra.mxu0 0
  %1143 = vmatprep.subr.bf16.mxu0 0
  %1144 = vmatpush2.bf16.msra.mxu0 0
  %1145 = vmatprep.mubr.bf16.mxu0 0
  %1146 = vmatmul.mubr.bf16.gmra.mxu0 %v1111
  %v1147 = vpop.f32.mrf.mxu0
  %v1148 = vadd.f32 %v1108, %v1147
  %v1149 = vpop.f32.mrf.mxu0
  %v1150 = vadd.f32 %v692, %v1149
  %v1151 = vpop.f32.mrf.mxu0
  %v1152 = vpop.f32.mrf.mxu0
  %1153 = vdwg.mxu0
  %v1154 = vxor.u32 %v1148, 2147483648
  %v1155 = vxor.u32 %v1150, 2147483648
  %v1156 = vmul.f32 %v1154, 1.442695
  %v1157 = vpow.pop %v1156
  %v1158 = vmul.f32 %v1155, 1.442695
  %v1159 = vpow.pop %v1158
  %v1160 = vadd.f32 %v1157, 1.0
  %v1161 = vadd.f32 %v1159, 1.0
  %v1162 = vrcp.pop %v1160
  %v1163 = vmul.f32 1.0, %v1162
  %v1164 = vrcp.pop %v1161
  %v1165 = vmul.f32 1.0, %v1164
  %v1166 = vtanh.pop %v1148
  %v1167 = vtanh.pop %v1150
  %v1168 = vmul.f32 %v1163, %v1074
  %1170 = vrot.lane.b32.xlu0 %v1166, 64
  %v1171 = vpop.permute.xlu0 %1170
  %v1173 = vmul.f32 %v1163, %v1171
  %1175 = vrot.lane.b32.xlu0 %v1173, 32
  %v1176 = vpop.permute.xlu0 %1175
  %v1178 = vadd.f32 %v1168, %v1176
  %v1179 = vtanh.pop %v1178
  %1181 = vrot.lane.b32.xlu0 %v1179, 64
  %v1182 = vpop.permute.xlu0 %1181
  %v1184 = vmul.f32 %v1163, %v1182
  %v1185 = vmul.f32 %v1165, %v1091
  %1187 = vrot.lane.b32.xlu0 %v1167, 64
  %v1188 = vpop.permute.xlu0 %1187
  %v1190 = vmul.f32 %v1165, %v1188
  %1192 = vrot.lane.b32.xlu0 %v1190, 32
  %v1193 = vpop.permute.xlu0 %1192
  %v1195 = vadd.f32 %v1185, %v1193
  %v1196 = vtanh.pop %v1195
  %1198 = vrot.lane.b32.xlu0 %v1196, 64
  %v1199 = vpop.permute.xlu0 %1198
  %v1201 = vmul.f32 %v1165, %v1199
  %1203 = vrot.lane.b32.xlu0 %v1184, 32
  %v1204 = vpop.permute.xlu0 %1203
  %1207 = vrot.lane.b32.xlu0 %v1201, 64
  %v1208 = vpop.permute.xlu0 %1207
  %v1210 = vsel %vm285, %v1204, %v1208
  %v1211 = vpack.c.bf16 %v1210, %v1210
  %v1213 = vsel %vm216, %v1211, 0
  %1215 = vmatprep.subr.bf16.mxu0 0
  %1216 = vmatpush1.bf16.msra.mxu0 0
  %1217 = vmatprep.subr.bf16.mxu0 0
  %1218 = vmatpush1.bf16.msra.mxu0 0
  %1219 = vmatprep.subr.bf16.mxu0 0
  %1220 = vmatpush1.bf16.msra.mxu0 0
  %1221 = vmatprep.subr.bf16.mxu0 0
  %1222 = vmatpush1.bf16.msra.mxu0 0
  %1223 = vmatprep.subr.bf16.mxu0 %v388
  %1224 = vmatpush1.bf16.msra.mxu0 %v387
  %1225 = vmatprep.subr.bf16.mxu0 %v386
  %1226 = vmatpush1.bf16.msra.mxu0 %v385
  %1227 = vmatprep.subr.bf16.mxu0 %v384
  %1228 = vmatpush1.bf16.msra.mxu0 %v383
  %1229 = vmatprep.subr.bf16.mxu0 %v382
  %1230 = vmatpush1.bf16.msra.mxu0 %v381
  %1231 = vmatprep.subr.bf16.mxu0 0
  %1232 = vmatpush2.bf16.msra.mxu0 0
  %1233 = vmatprep.subr.bf16.mxu0 0
  %1234 = vmatpush2.bf16.msra.mxu0 0
  %1235 = vmatprep.subr.bf16.mxu0 0
  %1236 = vmatpush2.bf16.msra.mxu0 0
  %1237 = vmatprep.subr.bf16.mxu0 0
  %1238 = vmatpush2.bf16.msra.mxu0 0
  %1239 = vmatprep.subr.bf16.mxu0 0
  %1240 = vmatpush2.bf16.msra.mxu0 0
  %1241 = vmatprep.subr.bf16.mxu0 0
  %1242 = vmatpush2.bf16.msra.mxu0 0
  %1243 = vmatprep.subr.bf16.mxu0 0
  %1244 = vmatpush2.bf16.msra.mxu0 0
  %1245 = vmatprep.subr.bf16.mxu0 0
  %1246 = vmatpush2.bf16.msra.mxu0 0
  %1247 = vmatprep.mubr.bf16.mxu0 0
  %1248 = vmatmul.mubr.bf16.gmra.mxu0 %v1213
  %v1249 = vpop.f32.mrf.mxu0
  %v1250 = vpop.f32.mrf.mxu0
  %v1251 = vadd.f32 %v335, %v1250
  %v1252 = vpop.f32.mrf.mxu0
  %v1253 = vpop.f32.mrf.mxu0
  %1254 = vdwg.mxu0
  %v1255 = vxor.u32 %v1251, 2147483648
  %v1256 = vmul.f32 %v1255, 1.442695
  %v1257 = vpow.pop %v1256
  %v1258 = vadd.f32 %v1257, 1.0
  %v1259 = vrcp.pop %v1258
  %v1260 = vmul.f32 1.0, %v1259
  %v1261 = vtanh.pop %v1251
  %v1262 = vmul.f32 %v1260, %v1195
  %1264 = vrot.lane.b32.xlu0 %v1261, 64
  %v1265 = vpop.permute.xlu0 %1264
  %v1267 = vmul.f32 %v1260, %v1265
  %1269 = vrot.lane.b32.xlu0 %v1267, 32
  %v1270 = vpop.permute.xlu0 %1269
  %v1272 = vadd.f32 %v1262, %v1270
  %v1273 = vtanh.pop %v1272
  %1275 = vrot.lane.b32.xlu0 %v1273, 64
  %v1276 = vpop.permute.xlu0 %1275
  %v1278 = vmul.f32 %v1260, %v1276
  %v1279 = vpack.c.bf16 %v1278, %v1278
  %v1280 = vld [vmem:[%s11] sm:$0xf]
  %v1281 = vld [vmem:[%s11 + $0x4] sm:$0xf]
  %v1282 = vld [vmem:[%s11 + $0x8] sm:$0xf]
  %v1283 = vld [vmem:[%s11 + $0xc] sm:$0xf]
  %v1284 = vld [vmem:[%s12] sm:$0x1]
  %v1286 = vlaneseq
  %v1287 = vshrl.u32 %v1286, 7
  %v1288 = vsub.s32 0, %v1287
  %v1289 = vrot.slane %v1284, %v1288
  %1292 = vrot.lane.b32.xlu0 %v1279, 32
  %v1293 = vpop.permute.xlu0 %1292
  %v1298 = vunpack.c.l.b16 %v1280
  %v1299 = vunpack.c.l.b16 %v1281
  %v1300 = vunpack.c.l.b16 %v1282
  %v1301 = vunpack.c.l.b16 %v1283
  %v1302 = vpack.c.b16 %v1299, %v1298
  %v1303 = vpack.c.b16 %v1301, %v1300
  %v1307 = vsel %vm285, %v1293, 0
  %1309 = vmatprep.subr.bf16.mxu0 0
  %1310 = vmatpush1.bf16.msra.mxu0 0
  %1311 = vmatprep.subr.bf16.mxu0 0
  %1312 = vmatpush1.bf16.msra.mxu0 0
  %1313 = vmatprep.subr.bf16.mxu0 0
  %1314 = vmatpush1.bf16.msra.mxu0 0
  %1315 = vmatprep.subr.bf16.mxu0 0
  %1316 = vmatpush1.bf16.msra.mxu0 0
  %1317 = vmatprep.subr.bf16.mxu0 0
  %1318 = vmatpush1.bf16.msra.mxu0 0
  %1319 = vmatprep.subr.bf16.mxu0 0
  %1320 = vmatpush1.bf16.msra.mxu0 0
  %1321 = vmatprep.subr.bf16.mxu0 0
  %1322 = vmatpush1.bf16.msra.mxu0 %v1303
  %1323 = vmatprep.subr.bf16.mxu0 0
  %1324 = vmatpush1.bf16.msra.mxu0 %v1302
  %1325 = vmatprep.subr.bf16.mxu0 0
  %1326 = vmatpush2.bf16.msra.mxu0 0
  %1327 = vmatprep.subr.bf16.mxu0 0
  %1328 = vmatpush2.bf16.msra.mxu0 0
  %1329 = vmatprep.subr.bf16.mxu0 0
  %1330 = vmatpush2.bf16.msra.mxu0 0
  %1331 = vmatprep.subr.bf16.mxu0 0
  %1332 = vmatpush2.bf16.msra.mxu0 0
  %1333 = vmatprep.subr.bf16.mxu0 0
  %1334 = vmatpush2.bf16.msra.mxu0 0
  %1335 = vmatprep.subr.bf16.mxu0 0
  %1336 = vmatpush2.bf16.msra.mxu0 0
  %1337 = vmatprep.subr.bf16.mxu0 0
  %1338 = vmatpush2.bf16.msra.mxu0 0
  %1339 = vmatprep.subr.bf16.mxu0 0
  %1340 = vmatpush2.bf16.msra.mxu0 0
  %1341 = vmatprep.mubr.bf16.mxu0 0
  %1342 = vmatmul.mubr.bf16.gmra.mxu0 %v1307
  %v1343 = vpop.f32.mrf.mxu0
  %v1344 = vadd.f32 %v1289, %v1343
  %v1345 = vpop.f32.mrf.mxu0
  %v1346 = vpop.f32.mrf.mxu0
  %v1347 = vpop.f32.mrf.mxu0
  %1348 = vdwg.mxu0
  %v1349 = vmax.f32 %v1344, 0.0
  %v1350 = vpack.c.bf16 %v1349, %v1349
  %v1351 = vld [vmem:[%s13] sm:$0xf]
  %v1352 = vld [vmem:[%s13 + $0x4] sm:$0xf]
  %v1353 = vld [vmem:[%s13 + $0x8] sm:$0xf]
  %v1354 = vld [vmem:[%s13 + $0xc] sm:$0xf]
  %v1355 = vld [vmem:[%s14] sm:$0x1]
  %v1357 = vlaneseq
  %v1358 = vshrl.u32 %v1357, 7
  %v1359 = vsub.s32 0, %v1358
  %v1360 = vrot.slane %v1355, %v1359
  %v1366 = vunpack.c.l.b16 %v1351
  %v1367 = vunpack.c.l.b16 %v1352
  %v1368 = vunpack.c.l.b16 %v1353
  %v1369 = vunpack.c.l.b16 %v1354
  %v1370 = vpack.c.b16 %v1367, %v1366
  %v1371 = vpack.c.b16 %v1369, %v1368
  %v1375 = vsel %vm285, %v1350, 0
  %1377 = vmatprep.subr.bf16.mxu0 0
  %1378 = vmatpush1.bf16.msra.mxu0 0
  %1379 = vmatprep.subr.bf16.mxu0 0
  %1380 = vmatpush1.bf16.msra.mxu0 0
  %1381 = vmatprep.subr.bf16.mxu0 0
  %1382 = vmatpush1.bf16.msra.mxu0 0
  %1383 = vmatprep.subr.bf16.mxu0 0
  %1384 = vmatpush1.bf16.msra.mxu0 0
  %1385 = vmatprep.subr.bf16.mxu0 0
  %1386 = vmatpush1.bf16.msra.mxu0 0
  %1387 = vmatprep.subr.bf16.mxu0 0
  %1388 = vmatpush1.bf16.msra.mxu0 0
  %1389 = vmatprep.subr.bf16.mxu0 0
  %1390 = vmatpush1.bf16.msra.mxu0 %v1371
  %1391 = vmatprep.subr.bf16.mxu0 0
  %1392 = vmatpush1.bf16.msra.mxu0 %v1370
  %1393 = vmatprep.subr.bf16.mxu0 0
  %1394 = vmatpush2.bf16.msra.mxu0 0
  %1395 = vmatprep.subr.bf16.mxu0 0
  %1396 = vmatpush2.bf16.msra.mxu0 0
  %1397 = vmatprep.subr.bf16.mxu0 0
  %1398 = vmatpush2.bf16.msra.mxu0 0
  %1399 = vmatprep.subr.bf16.mxu0 0
  %1400 = vmatpush2.bf16.msra.mxu0 0
  %1401 = vmatprep.subr.bf16.mxu0 0
  %1402 = vmatpush2.bf16.msra.mxu0 0
  %1403 = vmatprep.subr.bf16.mxu0 0
  %1404 = vmatpush2.bf16.msra.mxu0 0
  %1405 = vmatprep.subr.bf16.mxu0 0
  %1406 = vmatpush2.bf16.msra.mxu0 0
  %1407 = vmatprep.subr.bf16.mxu0 0
  %1408 = vmatpush2.bf16.msra.mxu0 0
  %1409 = vmatprep.mubr.bf16.mxu0 0
  %1410 = vmatmul.mubr.bf16.gmra.mxu0 %v1375
  %v1411 = vpop.f32.mrf.mxu0
  %v1412 = vadd.f32 %v1360, %v1411
  %v1413 = vpop.f32.mrf.mxu0
  %v1414 = vpop.f32.mrf.mxu0
  %v1415 = vpop.f32.mrf.mxu0
  %1416 = vdwg.mxu0
  %v1417 = vmax.f32 %v1412, 0.0
  %v1418 = vpack.c.bf16 %v1417, %v1417
  %v1419 = vld [vmem:[%s15] sm:$0xf]
  %v1420 = vld [vmem:[%s15 + $0x4] sm:$0xf]
  %v1421 = vld [vmem:[#allocation2] sm:$0x1]
  %v1423 = vlaneseq
  %v1424 = vshrl.u32 %v1423, 7
  %v1425 = vsub.s32 0, %v1424
  %v1426 = vrot.slane %v1421, %v1425
  %v1430 = vunpack.c.l.b16 %v1419
  %v1431 = vunpack.c.l.b16 %v1420
  %v1432 = vpack.c.b16 %v1431, %v1430
  %vm1434 = vcmask 130048
  %v1436 = vsel %vm1434, %v1418, 0
  %1438 = vmatprep.subr.bf16.mxu0 0
  %1439 = vmatpush1.bf16.msra.mxu0 0
  %1440 = vmatprep.subr.bf16.mxu0 0
  %1441 = vmatpush1.bf16.msra.mxu0 0
  %1442 = vmatprep.subr.bf16.mxu0 0
  %1443 = vmatpush1.bf16.msra.mxu0 0
  %1444 = vmatprep.subr.bf16.mxu0 0
  %1445 = vmatpush1.bf16.msra.mxu0 0
  %1446 = vmatprep.subr.bf16.mxu0 0
  %1447 = vmatpush1.bf16.msra.mxu0 0
  %1448 = vmatprep.subr.bf16.mxu0 0
  %1449 = vmatpush1.bf16.msra.mxu0 0
  %1450 = vmatprep.subr.bf16.mxu0 0
  %1451 = vmatpush1.bf16.msra.mxu0 0
  %1452 = vmatprep.subr.bf16.mxu0 0
  %1453 = vmatpush1.bf16.msra.mxu0 %v1432
  %1454 = vmatprep.subr.bf16.mxu0 0
  %1455 = vmatpush2.bf16.msra.mxu0 0
  %1456 = vmatprep.subr.bf16.mxu0 0
  %1457 = vmatpush2.bf16.msra.mxu0 0
  %1458 = vmatprep.subr.bf16.mxu0 0
  %1459 = vmatpush2.bf16.msra.mxu0 0
  %1460 = vmatprep.subr.bf16.mxu0 0
  %1461 = vmatpush2.bf16.msra.mxu0 0
  %1462 = vmatprep.subr.bf16.mxu0 0
  %1463 = vmatpush2.bf16.msra.mxu0 0
  %1464 = vmatprep.subr.bf16.mxu0 0
  %1465 = vmatpush2.bf16.msra.mxu0 0
  %1466 = vmatprep.subr.bf16.mxu0 0
  %1467 = vmatpush2.bf16.msra.mxu0 0
  %1468 = vmatprep.subr.bf16.mxu0 0
  %1469 = vmatpush2.bf16.msra.mxu0 0
  %1470 = vmatprep.mubr.bf16.mxu0 0
  %1471 = vmatmul.mubr.bf16.gmra.mxu0 %v1436
  %v1472 = vpop.f32.mrf.mxu0
  %v1473 = vadd.f32 %v1426, %v1472
  %v1474 = vpop.f32.mrf.mxu0
  %v1475 = vpop.f32.mrf.mxu0
  %v1476 = vpop.f32.mrf.mxu0
  %1477 = vdwg.mxu0
  %vm1478 = vcmask 1024
  %1479 = vst.msk [vmem:[%s17] sm:$0x3] %vm1478, %v1473
  // Predicated region
  $region70: #{smp_lstm_forward.1} parent=0 // pred_check
    _
  $region71: #{smp_lstm_forward.1} parent=0 // pred_check_branch
    %1481 = sbr.rel (0) target = $region73
  $region72: #{smp_lstm_forward.1} parent=0 // pred_region
    _
  $region73: #{smp_lstm_forward.1} parent=0 // pred_fallthru
    _
  // Predicated region
  $region74: #{smp_lstm_forward.1} parent=0 // pred_check
    _
  $region75: #{smp_lstm_forward.1} parent=0 // pred_check_branch
    %1483 = sbr.rel (0) target = $region77
  $region76: #{smp_lstm_forward.1} parent=0 // pred_region
    _
  $region77: #{smp_lstm_forward.1} parent=0 // pred_fallthru
    _

</llo_original>
